<compile_context>
chip_gen: v7x
topology: tpu7x:2x2x1
jax: 0.10.0
libtpu: 0.0.40
codegen_flags: <defaults>
</compile_context>

<pallas_src>
import jax
import jax.numpy as jnp
import numpy as np
from jax.experimental import pallas as pl
from jax.experimental.pallas import tpu as pltpu


# ----------------------------------------------------------------------------
# Fused whole-network kernel (one sample per grid step)
# ----------------------------------------------------------------------------
def net_kernel(xp_ref, w1_ref, b1_ref, w2_ref, b2_ref, wfc_ref, s_ref, bfc_ref,
               o_ref, h1pad_ref):
    """Fused conv1+pool1 -> conv2+pool2 -> fc+log_softmax for one sample.

    xp_ref    : (1, 64, 16)  mod-4 parity planes of the padded 32x32 input;
                             row = i*8+j of the 8x8 grid, lane = ph*4+pw.
    w1_ref    : (64, 256)    zero-expanded conv1 weight.
                             K = (row-base, col-base)*16 + parity plane;
                             N = (pool-offset combo)*16 + cout.
    b1_ref    : (1, 64)      conv1 bias tiled over the 4 output-parity groups.
    w2_ref    : (576, 128)   zero-expanded conv2 weight (bf16).
                             K = (grid-row-off*3+grid-col-off)*64 + plane*16 + cin;
                             N = (pool-offset combo)*32 + cout.
    b2_ref    : (1, 32)
    wfc_ref   : (61, 320)    fc weight keyed by (slab row t=i2*9+j2, class*32+c);
                             zero on the 12 garbage slab rows.
    s_ref     : (320, 10)    lane segment-sum selector: S[n*32+c, n'] = (n==n').
    bfc_ref   : (1, 10)
    o_ref     : (1, 1, 10)   log-probabilities for this sample.
    h1pad_ref : (81, 64) f32 scratch: zero-padded 9x9 grid of pooled conv1
                             output, lanes = (parity plane)*16 + channel.
    """
    x = xp_ref[0]                                                  # (64, 16)

    # ---------------- conv1 + maxpool2 (one MXU matmul) ----------------
    # Patch: 4 base offsets {0,1,8,9} of the slab, each 16 parity lanes -> K=64.
    x1 = jnp.concatenate([x[0:55, :], x[1:56, :], x[8:63, :], x[9:64, :]],
                         axis=1)                                   # (55, 64)
    y1 = jnp.dot(x1, w1_ref[...], preferred_element_type=jnp.float32)  # (55,256)
    # 2x2 pool = max over the 4 pool-offset groups (64 contiguous lanes each).
    p1 = jnp.maximum(jnp.maximum(y1[:, 0:64], y1[:, 64:128]),
                     jnp.maximum(y1[:, 128:192], y1[:, 192:256]))
    h1 = jnp.maximum(p1 + b1_ref[...], 0.0)                        # (55, 64)

    # Restride h1 (stride-8 slab, 49 valid rows) into the zero-padded stride-9
    # slab used by conv2.  Interior rows are fully overwritten; the full zero
    # fill (~11 row-groups) is kept because the 1-wide border must be zero.
    h1pad_ref[...] = jnp.zeros(h1pad_ref.shape, jnp.float32)
    for ii in range(7):
        h1pad_ref[(ii + 1) * 9 + 1:(ii + 1) * 9 + 8, :] = \
            h1[ii * 8:ii * 8 + 7, :]
    hp = h1pad_ref[...]                                            # (81, 64)

    # ---------------- conv2 + maxpool2 (one bf16 MXU matmul) ----------------
    # Patch: 9 grid offsets (3x3), each a lane-dense 64-lane slice -> K=576.
    x2 = jnp.concatenate(
        [hp[(gr * 9 + gc):(gr * 9 + gc) + 61, :]
         for gr in range(3) for gc in range(3)],
        axis=1)                                                    # (61, 576)
    y2 = jnp.dot(x2.astype(jnp.bfloat16), w2_ref[...],
                 preferred_element_type=jnp.float32)               # (61, 128)
    q2 = jnp.maximum(jnp.maximum(y2[:, 0:32], y2[:, 32:64]),
                     jnp.maximum(y2[:, 64:96], y2[:, 96:128]))
    h2 = jnp.maximum(q2 + b2_ref[...], 0.0)                        # (61, 32)

    # ---------------- fc + log_softmax ----------------
    # logits[n] = sum_{t,c} h2[t,c] * wfc[t, n*32+c]; garbage slab rows carry
    # zero weights.  Lane-tile h2 over the 10 classes, multiply, reduce over
    # slab rows, then segment-sum lanes into classes with one tiny matmul.
    h2t = jnp.concatenate([h2] * 10, axis=1)                       # (61, 320)
    colsum = jnp.sum(h2t * wfc_ref[...], axis=0, keepdims=True)    # (1, 320)
    logits = jnp.dot(colsum, s_ref[...],
                     preferred_element_type=jnp.float32) + bfc_ref[...]  # (1,10)
    m = jnp.max(logits, axis=-1, keepdims=True)
    lse = jnp.log(jnp.sum(jnp.exp(logits - m), axis=-1, keepdims=True))
    o_ref[0] = (logits - m - lse).astype(o_ref.dtype)


# ----------------------------------------------------------------------------
# One-time parameter preparation (hoisted out of the per-forward path)
# ----------------------------------------------------------------------------
def prep_params(params):
    w1, b1, w2, b2, wfc, bfc = [np.asarray(p, np.float32) for p in params]

    # conv1: zero-expanded (K=64, N=256) weight.
    #   K  = (row-base br, col-base bc)*16 + (row-parity*4 + col-parity)
    #   N  = combo*16 + cout,  combo = (dh*2+dw)*4 + (qh*2+qw)
    # (pool offsets dh,dw outermost so the pool max is over 64-lane groups).
    w1_all = np.zeros((64, 256), np.float32)
    for dh in range(2):
        for dw in range(2):
            for qh in range(2):
                for qw in range(2):
                    r, s = 2 * qh + dh, 2 * qw + dw
                    combo = (dh * 2 + dw) * 4 + (qh * 2 + qw)
                    for kh in range(5):
                        for kw in range(5):
                            u, v = r + kh, s + kw
                            k = ((u // 4) * 2 + (v // 4)) * 16 \
                                + (u % 4) * 4 + (v % 4)
                            w1_all[k, combo * 16:combo * 16 + 16] = w1[:, 0, kh, kw]
    b1t = np.tile(b1.reshape(1, 16), (1, 4))                       # (1, 64)

    # conv2: zero-expanded (K=576, N=128) weight, bf16 for the MXU.
    w2_all = np.zeros((576, 128), np.float32)
    for r2 in range(2):
        for s2 in range(2):
            combo = r2 * 2 + s2
            for kh in range(5):
                for kw in range(5):
                    u, v = r2 + kh, s2 + kw
                    k0 = ((u // 2) * 3 + (v // 2)) * 64 \
                        + ((u % 2) * 2 + (v % 2)) * 16
                    w2_all[k0:k0 + 16, combo * 32:combo * 32 + 32] = \
                        w2[:, :, kh, kw].T                          # (cin, cout)
    b2r = b2.reshape(1, 32)

    # fc: weight keyed by (slab row t = i2*9 + j2, class*32 + channel); the 12
    # garbage slab rows stay zero so they never contribute to the logits.
    wfc4 = wfc.reshape(10, 32, 7, 7)                               # (n, c, H, W)
    wfc2 = np.zeros((61, 320), np.float32)
    for i2 in range(7):
        for j2 in range(7):
            t = i2 * 9 + j2
            for n in range(10):
                wfc2[t, n * 32:(n + 1) * 32] = wfc4[n, :, i2, j2]
    seg = np.zeros((320, 10), np.float32)                          # lane->class
    for n in range(10):
        seg[n * 32:(n + 1) * 32, n] = 1.0
    bfcr = bfc.reshape(1, 10)

    return (jnp.asarray(w1_all), jnp.asarray(b1t),
            jnp.asarray(w2_all).astype(jnp.bfloat16), jnp.asarray(b2r),
            jnp.asarray(wfc2), jnp.asarray(seg), jnp.asarray(bfcr))


# ----------------------------------------------------------------------------
# Forward pass
# ----------------------------------------------------------------------------
def _prep_input(x_nchw):
    """(B,1,28,28) -> (B,64,16): mod-4 parity planes of the padded input,
    grid flattened into sublanes (row = i*8+j), planes packed into lanes."""
    b = x_nchw.shape[0]
    x = x_nchw[:, 0].astype(jnp.float32)                           # (B,28,28)
    xpad = jnp.pad(x, ((0, 0), (2, 2), (2, 2)))                    # (B,32,32)
    xp = xpad.reshape(b, 8, 4, 8, 4).transpose(0, 1, 3, 2, 4).reshape(b, 64, 16)
    return xp


def net_forward(x_nchw, prepped):
    b = x_nchw.shape[0]
    xp = _prep_input(x_nchw)
    w1_all, b1t, w2_all, b2r, wfc2, seg, bfcr = prepped

    def full(arr):
        return pl.BlockSpec(arr.shape, lambda i: (0,) * arr.ndim)

    out = pl.pallas_call(
        net_kernel,
        out_shape=jax.ShapeDtypeStruct((b, 1, 10), jnp.float32),
        grid_spec=pltpu.PrefetchScalarGridSpec(
            num_scalar_prefetch=0,
            grid=(b,),                                   # one sample per step
            in_specs=[pl.BlockSpec((1, 64, 16), lambda i: (i, 0, 0)),
                      full(w1_all), full(b1t), full(w2_all), full(b2r),
                      full(wfc2), full(seg), full(bfcr)],
            out_specs=pl.BlockSpec((1, 1, 10), lambda i: (i, 0, 0)),
            scratch_shapes=[pltpu.VMEM((81, 64), jnp.float32)]),
        compiler_params=pltpu.CompilerParams(
            dimension_semantics=("parallel",)),          # 2 TCs on v7x
    )(xp, w1_all, b1t, w2_all, b2r, wfc2, seg, bfcr)
    # Per-sample working set is ~0.5 MiB, so this tiling also fits v7x's
    # smaller (64 MiB) VMEM without an explicit vmem_limit_bytes.
    return out.reshape(b, 10)


# ----------------------------------------------------------------------------
# Pure-JAX reference (XLA, outside Pallas) for correctness checking
# ----------------------------------------------------------------------------
def net_reference(x_nchw, params):
    w1, b1, w2, b2, wfc, bfc = params
    x = jnp.transpose(x_nchw, (0, 2, 3, 1)).astype(jnp.float32)    # NHWC

    def conv(x, w, b):
        wt = jnp.transpose(w, (2, 3, 1, 0))                        # HWIO
        y = jax.lax.conv_general_dilated(
            x, wt, (1, 1), ((2, 2), (2, 2)),
            dimension_numbers=('NHWC', 'HWIO', 'NHWC'))
        return jax.nn.relu(y + b)

    def pool(x):
        bb, h, w, c = x.shape
        return x.reshape(bb, h // 2, 2, w // 2, 2, c).max(axis=(2, 4))

    h1 = pool(conv(x, w1, b1))
    h2 = pool(conv(h1, w2, b2))
    feat = jnp.transpose(h2, (0, 3, 1, 2)).reshape(x.shape[0], -1)
    logits = feat @ wfc.T + bfc
    return jax.nn.log_softmax(logits, axis=-1)


# ----------------------------------------------------------------------------
# Main
# ----------------------------------------------------------------------------
if __name__ == "__main__":
    key = jax.random.PRNGKey(0)
    k1, k2, k3, k4, k5, k6, kx = jax.random.split(key, 7)

    # Deterministic synthetic parameters (PyTorch layout shapes).
    w1 = jax.random.normal(k1, (16, 1, 5, 5), jnp.float32) * 0.2     # Conv2d(1,16,5)
    b1 = jax.random.normal(k2, (16,), jnp.float32) * 0.1
    w2 = jax.random.normal(k3, (32, 16, 5, 5), jnp.float32) * 0.05   # Conv2d(16,32,5)
    b2 = jax.random.normal(k4, (32,), jnp.float32) * 0.1
    wfc = jax.random.normal(k5, (10, 32 * 7 * 7), jnp.float32) * 0.02  # Linear(1568,10)
    bfc = jax.random.normal(k6, (10,), jnp.float32) * 0.1
    params = (w1, b1, w2, b2, wfc, bfc)

    # Input: batch=2, 1 channel, 28x28 (28 is required by fc = 32*7*7).
    x = jax.random.normal(kx, (2, 1, 28, 28), jnp.float32)

    prepped = prep_params(params)               # one-time weight prep
    fwd = jax.jit(lambda xx: net_forward(xx, prepped))
    out = jax.block_until_ready(fwd(x))

    assert out.shape == (2, 10) and out.dtype == jnp.float32

    # Correctness vs. pure-JAX reference (loose tolerance: conv2 MXU runs bf16).
    ref = jax.block_until_ready(jax.jit(lambda xx: net_reference(xx, params))(x))
    np.testing.assert_allclose(np.asarray(out), np.asarray(ref),
                               rtol=5e-2, atol=5e-2)
    # log_softmax sanity: rows exponentiate-and-sum to 1.
    np.testing.assert_allclose(np.exp(np.asarray(out)).sum(axis=1),
                               np.ones(2), rtol=1e-4, atol=1e-4)
    print("KERNEL_OK")
</pallas_src>

<mosaic_0001>
module attributes {stable_mosaic.version = 11 : i64} {
  func.func @net_kernel(%arg0: i32, %arg1: memref<1x64x16xf32, #tpu.memory_space<vmem>>, %arg2: memref<64x256xf32, #tpu.memory_space<vmem>>, %arg3: memref<1x64xf32, #tpu.memory_space<vmem>>, %arg4: memref<576x128xbf16, #tpu.memory_space<vmem>>, %arg5: memref<1x32xf32, #tpu.memory_space<vmem>>, %arg6: memref<61x320xf32, #tpu.memory_space<vmem>>, %arg7: memref<320x10xf32, #tpu.memory_space<vmem>>, %arg8: memref<1x10xf32, #tpu.memory_space<vmem>>, %arg9: memref<1x1x10xf32, #tpu.memory_space<vmem>>, %arg10: memref<81x64xf32, #tpu.memory_space<vmem>>) attributes {dimension_semantics = [#tpu.dimension_semantics<parallel>], iteration_bounds = array<i64: 2>, scalar_prefetch = 0 : i64, scratch_operands = 1 : i64, tpu.core_type = #tpu.core_type<tc>, window_params = [{transform_indices = @transform_0, window_bounds = array<i64: 1, 64, 16>}, {pipeline_mode = #tpu.pipeline_mode<synchronous>, transform_indices = @transform_1, window_bounds = array<i64: 64, 256>}, {pipeline_mode = #tpu.pipeline_mode<synchronous>, transform_indices = @transform_2, window_bounds = array<i64: 1, 64>}, {pipeline_mode = #tpu.pipeline_mode<synchronous>, transform_indices = @transform_3, window_bounds = array<i64: 576, 128>}, {pipeline_mode = #tpu.pipeline_mode<synchronous>, transform_indices = @transform_4, window_bounds = array<i64: 1, 32>}, {pipeline_mode = #tpu.pipeline_mode<synchronous>, transform_indices = @transform_5, window_bounds = array<i64: 61, 320>}, {pipeline_mode = #tpu.pipeline_mode<synchronous>, transform_indices = @transform_6, window_bounds = array<i64: 320, 10>}, {pipeline_mode = #tpu.pipeline_mode<synchronous>, transform_indices = @transform_7, window_bounds = array<i64: 1, 10>}, {transform_indices = @transform_8, window_bounds = array<i64: 1, 1, 10>}]} {
    %c0 = arith.constant 0 : index
    %c0_0 = arith.constant 0 : index
    %c0_1 = arith.constant 0 : index
    %0 = vector.load %arg1[%c0, %c0_0, %c0_1] : memref<1x64x16xf32, #tpu.memory_space<vmem>>, vector<1x64x16xf32>
    %1 = vector.shape_cast %0 : vector<1x64x16xf32> to vector<64x16xf32>
    %2 = vector.extract_strided_slice %1 {offsets = [0, 0], sizes = [55, 16], strides = [1, 1]} : vector<64x16xf32> to vector<55x16xf32>
    %3 = vector.extract_strided_slice %1 {offsets = [1, 0], sizes = [55, 16], strides = [1, 1]} : vector<64x16xf32> to vector<55x16xf32>
    %4 = vector.extract_strided_slice %1 {offsets = [8, 0], sizes = [55, 16], strides = [1, 1]} : vector<64x16xf32> to vector<55x16xf32>
    %5 = vector.extract_strided_slice %1 {offsets = [9, 0], sizes = [55, 16], strides = [1, 1]} : vector<64x16xf32> to vector<55x16xf32>
    %6 = tpu.concatenate %2, %3, %4, %5 in 1 : vector<55x16xf32>, vector<55x16xf32>, vector<55x16xf32>, vector<55x16xf32> -> vector<55x64xf32>
    %c0_2 = arith.constant 0 : index
    %c0_3 = arith.constant 0 : index
    %7 = vector.load %arg2[%c0_2, %c0_3] : memref<64x256xf32, #tpu.memory_space<vmem>>, vector<64x256xf32>
    %cst = arith.constant dense<0.000000e+00> : vector<55x256xf32>
    %8 = tpu.matmul %6, %7, %cst {dimension_numbers = #tpu.dot_dimension_numbers<[1], [0], [0], [1], [0, 0, 1, 1], [], []>} : vector<55x64xf32>, vector<64x256xf32>, vector<55x256xf32> -> vector<55x256xf32>
    %9 = vector.extract_strided_slice %8 {offsets = [0, 0], sizes = [55, 64], strides = [1, 1]} : vector<55x256xf32> to vector<55x64xf32>
    %10 = vector.extract_strided_slice %8 {offsets = [0, 64], sizes = [55, 64], strides = [1, 1]} : vector<55x256xf32> to vector<55x64xf32>
    %11 = arith.maximumf %9, %10 : vector<55x64xf32>
    %12 = vector.extract_strided_slice %8 {offsets = [0, 128], sizes = [55, 64], strides = [1, 1]} : vector<55x256xf32> to vector<55x64xf32>
    %13 = vector.extract_strided_slice %8 {offsets = [0, 192], sizes = [55, 64], strides = [1, 1]} : vector<55x256xf32> to vector<55x64xf32>
    %14 = arith.maximumf %12, %13 : vector<55x64xf32>
    %15 = arith.maximumf %11, %14 : vector<55x64xf32>
    %c0_4 = arith.constant 0 : index
    %c0_5 = arith.constant 0 : index
    %16 = vector.load %arg3[%c0_4, %c0_5] : memref<1x64xf32, #tpu.memory_space<vmem>>, vector<1x64xf32>
    %17 = vector.broadcast %16 : vector<1x64xf32> to vector<55x64xf32>
    %18 = arith.addf %15, %17 : vector<55x64xf32>
    %cst_6 = arith.constant 0.000000e+00 : f32
    %19 = vector.broadcast %cst_6 : f32 to vector<55x64xf32>
    %20 = arith.maximumf %18, %19 : vector<55x64xf32>
    %cst_7 = arith.constant 0.000000e+00 : f32
    %21 = vector.broadcast %cst_7 : f32 to vector<81x64xf32>
    %c0_8 = arith.constant 0 : index
    %c0_9 = arith.constant 0 : index
    %22 = vector.load %arg10[%c0_8, %c0_9] : memref<81x64xf32, #tpu.memory_space<vmem>>, vector<81x64xf32>
    tpu.vector_store %arg10[%c0_8, %c0_9], %21 {strides = array<i32>} : memref<81x64xf32, #tpu.memory_space<vmem>>, vector<81x64xf32>,
    %23 = vector.extract_strided_slice %20 {offsets = [0, 0], sizes = [7, 64], strides = [1, 1]} : vector<55x64xf32> to vector<7x64xf32>
    %c10 = arith.constant 10 : index
    %c0_10 = arith.constant 0 : index
    %24 = vector.load %arg10[%c10, %c0_10] : memref<81x64xf32, #tpu.memory_space<vmem>>, vector<7x64xf32>
    tpu.vector_store %arg10[%c10, %c0_10], %23 {strides = array<i32>} : memref<81x64xf32, #tpu.memory_space<vmem>>, vector<7x64xf32>,
    %25 = vector.extract_strided_slice %20 {offsets = [8, 0], sizes = [7, 64], strides = [1, 1]} : vector<55x64xf32> to vector<7x64xf32>
    %c19 = arith.constant 19 : index
    %c0_11 = arith.constant 0 : index
    %26 = vector.load %arg10[%c19, %c0_11] : memref<81x64xf32, #tpu.memory_space<vmem>>, vector<7x64xf32>
    tpu.vector_store %arg10[%c19, %c0_11], %25 {strides = array<i32>} : memref<81x64xf32, #tpu.memory_space<vmem>>, vector<7x64xf32>,
    %27 = vector.extract_strided_slice %20 {offsets = [16, 0], sizes = [7, 64], strides = [1, 1]} : vector<55x64xf32> to vector<7x64xf32>
    %c28 = arith.constant 28 : index
    %c0_12 = arith.constant 0 : index
    %28 = vector.load %arg10[%c28, %c0_12] : memref<81x64xf32, #tpu.memory_space<vmem>>, vector<7x64xf32>
    tpu.vector_store %arg10[%c28, %c0_12], %27 {strides = array<i32>} : memref<81x64xf32, #tpu.memory_space<vmem>>, vector<7x64xf32>,
    %29 = vector.extract_strided_slice %20 {offsets = [24, 0], sizes = [7, 64], strides = [1, 1]} : vector<55x64xf32> to vector<7x64xf32>
    %c37 = arith.constant 37 : index
    %c0_13 = arith.constant 0 : index
    %30 = vector.load %arg10[%c37, %c0_13] : memref<81x64xf32, #tpu.memory_space<vmem>>, vector<7x64xf32>
    tpu.vector_store %arg10[%c37, %c0_13], %29 {strides = array<i32>} : memref<81x64xf32, #tpu.memory_space<vmem>>, vector<7x64xf32>,
    %31 = vector.extract_strided_slice %20 {offsets = [32, 0], sizes = [7, 64], strides = [1, 1]} : vector<55x64xf32> to vector<7x64xf32>
    %c46 = arith.constant 46 : index
    %c0_14 = arith.constant 0 : index
    %32 = vector.load %arg10[%c46, %c0_14] : memref<81x64xf32, #tpu.memory_space<vmem>>, vector<7x64xf32>
    tpu.vector_store %arg10[%c46, %c0_14], %31 {strides = array<i32>} : memref<81x64xf32, #tpu.memory_space<vmem>>, vector<7x64xf32>,
    %33 = vector.extract_strided_slice %20 {offsets = [40, 0], sizes = [7, 64], strides = [1, 1]} : vector<55x64xf32> to vector<7x64xf32>
    %c55 = arith.constant 55 : index
    %c0_15 = arith.constant 0 : index
    %34 = vector.load %arg10[%c55, %c0_15] : memref<81x64xf32, #tpu.memory_space<vmem>>, vector<7x64xf32>
    tpu.vector_store %arg10[%c55, %c0_15], %33 {strides = array<i32>} : memref<81x64xf32, #tpu.memory_space<vmem>>, vector<7x64xf32>,
    %35 = vector.extract_strided_slice %20 {offsets = [48, 0], sizes = [7, 64], strides = [1, 1]} : vector<55x64xf32> to vector<7x64xf32>
    %c64 = arith.constant 64 : index
    %c0_16 = arith.constant 0 : index
    %36 = vector.load %arg10[%c64, %c0_16] : memref<81x64xf32, #tpu.memory_space<vmem>>, vector<7x64xf32>
    tpu.vector_store %arg10[%c64, %c0_16], %35 {strides = array<i32>} : memref<81x64xf32, #tpu.memory_space<vmem>>, vector<7x64xf32>,
    %c0_17 = arith.constant 0 : index
    %c0_18 = arith.constant 0 : index
    %37 = vector.load %arg10[%c0_17, %c0_18] : memref<81x64xf32, #tpu.memory_space<vmem>>, vector<81x64xf32>
    %38 = vector.extract_strided_slice %37 {offsets = [0, 0], sizes = [61, 64], strides = [1, 1]} : vector<81x64xf32> to vector<61x64xf32>
    %39 = vector.extract_strided_slice %37 {offsets = [1, 0], sizes = [61, 64], strides = [1, 1]} : vector<81x64xf32> to vector<61x64xf32>
    %40 = vector.extract_strided_slice %37 {offsets = [2, 0], sizes = [61, 64], strides = [1, 1]} : vector<81x64xf32> to vector<61x64xf32>
    %41 = vector.extract_strided_slice %37 {offsets = [9, 0], sizes = [61, 64], strides = [1, 1]} : vector<81x64xf32> to vector<61x64xf32>
    %42 = vector.extract_strided_slice %37 {offsets = [10, 0], sizes = [61, 64], strides = [1, 1]} : vector<81x64xf32> to vector<61x64xf32>
    %43 = vector.extract_strided_slice %37 {offsets = [11, 0], sizes = [61, 64], strides = [1, 1]} : vector<81x64xf32> to vector<61x64xf32>
    %44 = vector.extract_strided_slice %37 {offsets = [18, 0], sizes = [61, 64], strides = [1, 1]} : vector<81x64xf32> to vector<61x64xf32>
    %45 = vector.extract_strided_slice %37 {offsets = [19, 0], sizes = [61, 64], strides = [1, 1]} : vector<81x64xf32> to vector<61x64xf32>
    %46 = vector.extract_strided_slice %37 {offsets = [20, 0], sizes = [61, 64], strides = [1, 1]} : vector<81x64xf32> to vector<61x64xf32>
    %47 = tpu.concatenate %38, %39, %40, %41, %42, %43, %44, %45, %46 in 1 : vector<61x64xf32>, vector<61x64xf32>, vector<61x64xf32>, vector<61x64xf32>, vector<61x64xf32>, vector<61x64xf32>, vector<61x64xf32>, vector<61x64xf32>, vector<61x64xf32> -> vector<61x576xf32>
    %48 = arith.truncf %47 : vector<61x576xf32> to vector<61x576xbf16>
    %c0_19 = arith.constant 0 : index
    %c0_20 = arith.constant 0 : index
    %49 = vector.load %arg4[%c0_19, %c0_20] : memref<576x128xbf16, #tpu.memory_space<vmem>>, vector<576x128xbf16>
    %cst_21 = arith.constant dense<0.000000e+00> : vector<61x128xf32>
    %50 = tpu.matmul %48, %49, %cst_21 {dimension_numbers = #tpu.dot_dimension_numbers<[1], [0], [0], [1], [0, 0, 1, 1], [], []>} : vector<61x576xbf16>, vector<576x128xbf16>, vector<61x128xf32> -> vector<61x128xf32>
    %51 = vector.extract_strided_slice %50 {offsets = [0, 0], sizes = [61, 32], strides = [1, 1]} : vector<61x128xf32> to vector<61x32xf32>
    %52 = vector.extract_strided_slice %50 {offsets = [0, 32], sizes = [61, 32], strides = [1, 1]} : vector<61x128xf32> to vector<61x32xf32>
    %53 = arith.maximumf %51, %52 : vector<61x32xf32>
    %54 = vector.extract_strided_slice %50 {offsets = [0, 64], sizes = [61, 32], strides = [1, 1]} : vector<61x128xf32> to vector<61x32xf32>
    %55 = vector.extract_strided_slice %50 {offsets = [0, 96], sizes = [61, 32], strides = [1, 1]} : vector<61x128xf32> to vector<61x32xf32>
    %56 = arith.maximumf %54, %55 : vector<61x32xf32>
    %57 = arith.maximumf %53, %56 : vector<61x32xf32>
    %c0_22 = arith.constant 0 : index
    %c0_23 = arith.constant 0 : index
    %58 = vector.load %arg5[%c0_22, %c0_23] : memref<1x32xf32, #tpu.memory_space<vmem>>, vector<1x32xf32>
    %59 = vector.broadcast %58 : vector<1x32xf32> to vector<61x32xf32>
    %60 = arith.addf %57, %59 : vector<61x32xf32>
    %cst_24 = arith.constant 0.000000e+00 : f32
    %61 = vector.broadcast %cst_24 : f32 to vector<61x32xf32>
    %62 = arith.maximumf %60, %61 : vector<61x32xf32>
    %63 = tpu.concatenate %62, %62, %62, %62, %62, %62, %62, %62, %62, %62 in 1 : vector<61x32xf32>, vector<61x32xf32>, vector<61x32xf32>, vector<61x32xf32>, vector<61x32xf32>, vector<61x32xf32>, vector<61x32xf32>, vector<61x32xf32>, vector<61x32xf32>, vector<61x32xf32> -> vector<61x320xf32>
    %c0_25 = arith.constant 0 : index
    %c0_26 = arith.constant 0 : index
    %64 = vector.load %arg6[%c0_25, %c0_26] : memref<61x320xf32, #tpu.memory_space<vmem>>, vector<61x320xf32>
    %65 = arith.mulf %63, %64 : vector<61x320xf32>
    %cst_27 = arith.constant dense<0.000000e+00> : vector<320xf32>
    %66 = vector.multi_reduction <add>, %65, %cst_27 [0] : vector<61x320xf32> to vector<320xf32>
    %67 = vector.shape_cast %66 : vector<320xf32> to vector<1x320xf32>
    %c0_28 = arith.constant 0 : index
    %c0_29 = arith.constant 0 : index
    %68 = vector.load %arg7[%c0_28, %c0_29] : memref<320x10xf32, #tpu.memory_space<vmem>>, vector<320x10xf32>
    %cst_30 = arith.constant dense<0.000000e+00> : vector<1x10xf32>
    %69 = tpu.matmul %67, %68, %cst_30 {dimension_numbers = #tpu.dot_dimension_numbers<[1], [0], [0], [1], [0, 0, 1, 1], [], []>} : vector<1x320xf32>, vector<320x10xf32>, vector<1x10xf32> -> vector<1x10xf32>
    %c0_31 = arith.constant 0 : index
    %c0_32 = arith.constant 0 : index
    %70 = vector.load %arg8[%c0_31, %c0_32] : memref<1x10xf32, #tpu.memory_space<vmem>>, vector<1x10xf32>
    %71 = arith.addf %69, %70 : vector<1x10xf32>
    %cst_33 = arith.constant dense<0xFF800000> : vector<1xf32>
    %72 = vector.multi_reduction <maximumf>, %71, %cst_33 [1] : vector<1x10xf32> to vector<1xf32>
    %73 = vector.shape_cast %72 : vector<1xf32> to vector<1x1xf32>
    %74 = vector.broadcast %73 : vector<1x1xf32> to vector<1x10xf32>
    %75 = arith.subf %71, %74 : vector<1x10xf32>
    %76 = math.exp %75 : vector<1x10xf32>
    %cst_34 = arith.constant dense<0.000000e+00> : vector<1xf32>
    %77 = vector.multi_reduction <add>, %76, %cst_34 [1] : vector<1x10xf32> to vector<1xf32>
    %78 = vector.shape_cast %77 : vector<1xf32> to vector<1x1xf32>
    %79 = math.log %78 : vector<1x1xf32>
    %80 = vector.broadcast %73 : vector<1x1xf32> to vector<1x10xf32>
    %81 = arith.subf %71, %80 : vector<1x10xf32>
    %82 = vector.broadcast %79 : vector<1x1xf32> to vector<1x10xf32>
    %83 = arith.subf %81, %82 : vector<1x10xf32>
    %c0_35 = arith.constant 0 : index
    %c0_36 = arith.constant 0 : index
    %c0_37 = arith.constant 0 : index
    %84 = vector.load %arg9[%c0_35, %c0_36, %c0_37] : memref<1x1x10xf32, #tpu.memory_space<vmem>>, vector<1x1x10xf32>
    %85 = vector.shape_cast %84 : vector<1x1x10xf32> to vector<1x10xf32>
    %86 = vector.shape_cast %83 : vector<1x10xf32> to vector<1x1x10xf32>
    tpu.vector_store %arg9[%c0_35, %c0_36, %c0_37], %86 {strides = array<i32>} : memref<1x1x10xf32, #tpu.memory_space<vmem>>, vector<1x1x10xf32>,
    return
  }
  func.func @transform_0(%arg0: i32) -> (i32, i32, i32) {
    %c0_i32 = arith.constant 0 : i32
    %c0_i32_0 = arith.constant 0 : i32
    %c0_i32_1 = arith.constant 0 : i32
    return %arg0, %c0_i32, %c0_i32_0 : i32, i32, i32
  }
  func.func @transform_1(%arg0: i32) -> (i32, i32) {
    %c0_i32 = arith.constant 0 : i32
    %c0_i32_0 = arith.constant 0 : i32
    %c0_i32_1 = arith.constant 0 : i32
    return %c0_i32, %c0_i32_0 : i32, i32
  }
  func.func @transform_2(%arg0: i32) -> (i32, i32) {
    %c0_i32 = arith.constant 0 : i32
    %c0_i32_0 = arith.constant 0 : i32
    %c0_i32_1 = arith.constant 0 : i32
    return %c0_i32, %c0_i32_0 : i32, i32
  }
  func.func @transform_3(%arg0: i32) -> (i32, i32) {
    %c0_i32 = arith.constant 0 : i32
    %c0_i32_0 = arith.constant 0 : i32
    %c0_i32_1 = arith.constant 0 : i32
    return %c0_i32, %c0_i32_0 : i32, i32
  }
  func.func @transform_4(%arg0: i32) -> (i32, i32) {
    %c0_i32 = arith.constant 0 : i32
    %c0_i32_0 = arith.constant 0 : i32
    %c0_i32_1 = arith.constant 0 : i32
    return %c0_i32, %c0_i32_0 : i32, i32
  }
  func.func @transform_5(%arg0: i32) -> (i32, i32) {
    %c0_i32 = arith.constant 0 : i32
    %c0_i32_0 = arith.constant 0 : i32
    %c0_i32_1 = arith.constant 0 : i32
    return %c0_i32, %c0_i32_0 : i32, i32
  }
  func.func @transform_6(%arg0: i32) -> (i32, i32) {
    %c0_i32 = arith.constant 0 : i32
    %c0_i32_0 = arith.constant 0 : i32
    %c0_i32_1 = arith.constant 0 : i32
    return %c0_i32, %c0_i32_0 : i32, i32
  }
  func.func @transform_7(%arg0: i32) -> (i32, i32) {
    %c0_i32 = arith.constant 0 : i32
    %c0_i32_0 = arith.constant 0 : i32
    %c0_i32_1 = arith.constant 0 : i32
    return %c0_i32, %c0_i32_0 : i32, i32
  }
  func.func @transform_8(%arg0: i32) -> (i32, i32, i32) {
    %c0_i32 = arith.constant 0 : i32
    %c0_i32_0 = arith.constant 0 : i32
    %c0_i32_1 = arith.constant 0 : i32
    return %arg0, %c0_i32, %c0_i32_0 : i32, i32, i32
  }
}

</mosaic_0001>

<llo_original>
// kernel: _lambda_.1
$region0: #{_lambda_.1}
  #allocation0 [shape = 'u32[]', space=smem, size = 0x4, offset = 0x4, fixed_abs, tag = 'smem constant byte address 0x4 - core index']
  #allocation1 [shape = 'u32[144,128]{1,0:T(1,128)}', space=vmem, size = 0x12000, scoped, tag = 'internal scratch']
  #allocation2 [shape = 'f32[81,64]{1,0:T(8,128)}', space=vmem, size = 0xb000, scoped, tag = 'scratch operand']
  %s0 = inlined_call_operand.vmem [shape: f32[2,64,16], index: 0, kind: input, shape index: {}]
  %s1 = inlined_call_operand.vmem [shape: f32[64,256], index: 1, kind: input, shape index: {}]
  %s2 = inlined_call_operand.vmem [shape: f32[1,64], index: 2, kind: input, shape index: {}]
  %s3 = inlined_call_operand.vmem [shape: bf16[576,128], index: 3, kind: input, shape index: {}]
  %s4 = inlined_call_operand.vmem [shape: f32[1,32], index: 4, kind: input, shape index: {}]
  %s5 = inlined_call_operand.vmem [shape: f32[61,320], index: 5, kind: input, shape index: {}]
  %s6 = inlined_call_operand.vmem [shape: f32[320,10], index: 6, kind: input, shape index: {}]
  %s7 = inlined_call_operand.vmem [shape: f32[1,10], index: 7, kind: input, shape index: {}]
  %s8 = inlined_call_operand.hbm [shape: f32[2,1,10], index: 8, kind: output, shape index: {}]
  %s9 = sld [smem:[#allocation0]]
  $region65: #{_lambda_.1} parent=0
    _
  %s11 = ssub.s32 1, %s9
  %s12 = scalar_select 0, %s11, %s9
  $region1: #{_lambda_.1} parent=0
    #allocation3 [shape = 'u8[1024]{0}', space=vmem, size = 0x400, scoped, tag = 'output window, operand 0']
    #allocation4 [shape = 's32[2]{0}', space=sflag, size = 0x8, scoped, tag = 'scoped memory for _lambda_.1']
    %13 = vsyncpa [#allocation4], 0
    %s14 = scalar_lea.sflag [#allocation4], 1
    %15 = vsyncpa %s14, 0
    loop: start=0, step=1, limit=4
    $region2: #{_lambda_.1} parent=1 // loop_pre_header
      _
    $region3: #{_lambda_.1} parent=1 // loop_header
      %s17 = sphi 0, %s21
      %p18 = scmp.ge.s32.totalorder %s17, 4
      %s27 = sphi 0, %s29
      %s30 = sphi 0, %s27
      %s31 = sphi 0, %s30
      %s47 = sphi 0, %s31
      %s51 = sphi 0, %s51
      %s53 = sphi 0, %s51
      %s54 = sphi 0, %s53
      %s68 = sphi 0, %s54
      %s72 = sphi 0, %s72
      %s74 = sphi 0, %s72
      %s75 = sphi 0, %s74
      %s89 = sphi 0, %s75
      %s93 = sphi 0, %s93
      %s95 = sphi 0, %s93
      %s96 = sphi 0, %s95
      %s110 = sphi 0, %s96
      %s114 = sphi 0, %s114
      %s116 = sphi 0, %s114
      %s117 = sphi 0, %s116
      %s131 = sphi 0, %s117
      %s135 = sphi 0, %s135
      %s137 = sphi 0, %s135
      %s138 = sphi 0, %s137
      %s152 = sphi 0, %s138
      %s156 = sphi 0, %s156
      %s158 = sphi 0, %s156
      %s159 = sphi 0, %s158
      %s173 = sphi 0, %s159
      %s177 = sphi 0, %s177
      %s179 = sphi 0, %s177
      %s180 = sphi 0, %s179
      %s194 = sphi 0, %s180
      %s200 = sphi 0, %s202
      %s203 = sphi 0, %s200
      %s204 = sphi 0, %s203
      %s220 = sphi 0, %s204
    $region4: #{_lambda_.1} parent=1 // loop_header_branch
      %20 = sbr.rel (%p18) target = $region8
    $region5: #{_lambda_.1} parent=1 // loop_body
      %s22 = ssub.s32 %s17, 1
      %s23 = ssub.s32 %s17, 2
      %s24 = sadd.s32 %s17, 1
      %s25 = ssub.s32 %s17, %s24
      %p26 = scmp.eq.s32.totalorder %s25, 0
      %s28 = sadd.s32 %s27, 1
      %s29 = scalar_select %p26, %s27, %s28
      %p32 = pneg %p26
      %p33 = scmp.eq.s32.totalorder %s17, 1
      %p34 = por %p32, %p33
      %p35 = scmp.ne.s32.totalorder %s27, %s30
      %p36 = scmp.eq.s32.totalorder %s17, 0
      %p37 = por %p35, %p36
      %p38 = scmp.ne.s32.totalorder %s27, %s30
      %p39 = scmp.eq.s32.totalorder %s22, 1
      %p40 = por %p38, %p39
      %p41 = scmp.ne.s32.totalorder %s30, %s31
      %p42 = scmp.eq.s32.totalorder %s22, 0
      %p43 = por %p41, %p42
      %p44 = scmp.ne.s32.totalorder %s30, %s31
      %p45 = scmp.eq.s32.totalorder %s23, 1
      %p46 = por %p44, %p45
      %p48 = scmp.ne.s32.totalorder %s31, %s47
      %p49 = scmp.eq.s32.totalorder %s23, 0
      %p50 = por %p48, %p49
      %s52 = sadd.s32 %s51, 1
      %p55 = scmp.eq.s32.totalorder %s17, 1
      %p56 = scmp.ne.s32.totalorder %s51, %s53
      %p57 = scmp.eq.s32.totalorder %s17, 0
      %p58 = por %p56, %p57
      %p59 = scmp.ne.s32.totalorder %s51, %s53
      %p60 = scmp.eq.s32.totalorder %s22, 1
      %p61 = por %p59, %p60
      %p62 = scmp.ne.s32.totalorder %s53, %s54
      %p63 = scmp.eq.s32.totalorder %s22, 0
      %p64 = por %p62, %p63
      %p65 = scmp.ne.s32.totalorder %s53, %s54
      %p66 = scmp.eq.s32.totalorder %s23, 1
      %p67 = por %p65, %p66
      %p69 = scmp.ne.s32.totalorder %s54, %s68
      %p70 = scmp.eq.s32.totalorder %s23, 0
      %p71 = por %p69, %p70
      %s73 = sadd.s32 %s72, 1
      %p76 = scmp.eq.s32.totalorder %s17, 1
      %p77 = scmp.ne.s32.totalorder %s72, %s74
      %p78 = scmp.eq.s32.totalorder %s17, 0
      %p79 = por %p77, %p78
      %p80 = scmp.ne.s32.totalorder %s72, %s74
      %p81 = scmp.eq.s32.totalorder %s22, 1
      %p82 = por %p80, %p81
      %p83 = scmp.ne.s32.totalorder %s74, %s75
      %p84 = scmp.eq.s32.totalorder %s22, 0
      %p85 = por %p83, %p84
      %p86 = scmp.ne.s32.totalorder %s74, %s75
      %p87 = scmp.eq.s32.totalorder %s23, 1
      %p88 = por %p86, %p87
      %p90 = scmp.ne.s32.totalorder %s75, %s89
      %p91 = scmp.eq.s32.totalorder %s23, 0
      %p92 = por %p90, %p91
      %s94 = sadd.s32 %s93, 1
      %p97 = scmp.eq.s32.totalorder %s17, 1
      %p98 = scmp.ne.s32.totalorder %s93, %s95
      %p99 = scmp.eq.s32.totalorder %s17, 0
      %p100 = por %p98, %p99
      %p101 = scmp.ne.s32.totalorder %s93, %s95
      %p102 = scmp.eq.s32.totalorder %s22, 1
      %p103 = por %p101, %p102
      %p104 = scmp.ne.s32.totalorder %s95, %s96
      %p105 = scmp.eq.s32.totalorder %s22, 0
      %p106 = por %p104, %p105
      %p107 = scmp.ne.s32.totalorder %s95, %s96
      %p108 = scmp.eq.s32.totalorder %s23, 1
      %p109 = por %p107, %p108
      %p111 = scmp.ne.s32.totalorder %s96, %s110
      %p112 = scmp.eq.s32.totalorder %s23, 0
      %p113 = por %p111, %p112
      %s115 = sadd.s32 %s114, 1
      %p118 = scmp.eq.s32.totalorder %s17, 1
      %p119 = scmp.ne.s32.totalorder %s114, %s116
      %p120 = scmp.eq.s32.totalorder %s17, 0
      %p121 = por %p119, %p120
      %p122 = scmp.ne.s32.totalorder %s114, %s116
      %p123 = scmp.eq.s32.totalorder %s22, 1
      %p124 = por %p122, %p123
      %p125 = scmp.ne.s32.totalorder %s116, %s117
      %p126 = scmp.eq.s32.totalorder %s22, 0
      %p127 = por %p125, %p126
      %p128 = scmp.ne.s32.totalorder %s116, %s117
      %p129 = scmp.eq.s32.totalorder %s23, 1
      %p130 = por %p128, %p129
      %p132 = scmp.ne.s32.totalorder %s117, %s131
      %p133 = scmp.eq.s32.totalorder %s23, 0
      %p134 = por %p132, %p133
      %s136 = sadd.s32 %s135, 1
      %p139 = scmp.eq.s32.totalorder %s17, 1
      %p140 = scmp.ne.s32.totalorder %s135, %s137
      %p141 = scmp.eq.s32.totalorder %s17, 0
      %p142 = por %p140, %p141
      %p143 = scmp.ne.s32.totalorder %s135, %s137
      %p144 = scmp.eq.s32.totalorder %s22, 1
      %p145 = por %p143, %p144
      %p146 = scmp.ne.s32.totalorder %s137, %s138
      %p147 = scmp.eq.s32.totalorder %s22, 0
      %p148 = por %p146, %p147
      %p149 = scmp.ne.s32.totalorder %s137, %s138
      %p150 = scmp.eq.s32.totalorder %s23, 1
      %p151 = por %p149, %p150
      %p153 = scmp.ne.s32.totalorder %s138, %s152
      %p154 = scmp.eq.s32.totalorder %s23, 0
      %p155 = por %p153, %p154
      %s157 = sadd.s32 %s156, 1
      %p160 = scmp.eq.s32.totalorder %s17, 1
      %p161 = scmp.ne.s32.totalorder %s156, %s158
      %p162 = scmp.eq.s32.totalorder %s17, 0
      %p163 = por %p161, %p162
      %p164 = scmp.ne.s32.totalorder %s156, %s158
      %p165 = scmp.eq.s32.totalorder %s22, 1
      %p166 = por %p164, %p165
      %p167 = scmp.ne.s32.totalorder %s158, %s159
      %p168 = scmp.eq.s32.totalorder %s22, 0
      %p169 = por %p167, %p168
      %p170 = scmp.ne.s32.totalorder %s158, %s159
      %p171 = scmp.eq.s32.totalorder %s23, 1
      %p172 = por %p170, %p171
      %p174 = scmp.ne.s32.totalorder %s159, %s173
      %p175 = scmp.eq.s32.totalorder %s23, 0
      %p176 = por %p174, %p175
      %s178 = sadd.s32 %s177, 1
      %p181 = scmp.eq.s32.totalorder %s17, 1
      %p182 = scmp.ne.s32.totalorder %s177, %s179
      %p183 = scmp.eq.s32.totalorder %s17, 0
      %p184 = por %p182, %p183
      %p185 = scmp.ne.s32.totalorder %s177, %s179
      %p186 = scmp.eq.s32.totalorder %s22, 1
      %p187 = por %p185, %p186
      %p188 = scmp.ne.s32.totalorder %s179, %s180
      %p189 = scmp.eq.s32.totalorder %s22, 0
      %p190 = por %p188, %p189
      %p191 = scmp.ne.s32.totalorder %s179, %s180
      %p192 = scmp.eq.s32.totalorder %s23, 1
      %p193 = por %p191, %p192
      %p195 = scmp.ne.s32.totalorder %s180, %s194
      %p196 = scmp.eq.s32.totalorder %s23, 0
      %p197 = por %p195, %p196
      %s198 = ssub.s32 %s17, %s24
      %p199 = scmp.eq.s32.totalorder %s198, 0
      %s201 = sadd.s32 %s200, 1
      %s202 = scalar_select %p199, %s200, %s201
      %p205 = pneg %p199
      %p206 = scmp.eq.s32.totalorder %s17, 1
      %p207 = por %p205, %p206
      %p208 = scmp.ne.s32.totalorder %s200, %s203
      %p209 = scmp.eq.s32.totalorder %s17, 0
      %p210 = por %p208, %p209
      %p211 = scmp.ne.s32.totalorder %s200, %s203
      %p212 = scmp.eq.s32.totalorder %s22, 1
      %p213 = por %p211, %p212
      %p214 = scmp.ne.s32.totalorder %s203, %s204
      %p215 = scmp.eq.s32.totalorder %s22, 0
      %p216 = por %p214, %p215
      %p217 = scmp.ne.s32.totalorder %s203, %s204
      %p218 = scmp.eq.s32.totalorder %s23, 1
      %p219 = por %p217, %p218
      %p221 = scmp.ne.s32.totalorder %s204, %s220
      %p222 = scmp.eq.s32.totalorder %s23, 0
      %p223 = por %p221, %p222
      %p224 = scmp.le.s32.totalorder 1, %s17
      %p225 = scmp.lt.s32.totalorder %s17, 3
      %p226 = pnand %p224, %p225
      %p227 = pneg %p226
      // Predicated region
      $region9: #{_lambda_.1} parent=5 // pred_check
        _
      $region10: #{_lambda_.1} parent=5 // pred_check_branch
        %229 = sbr.rel (%p226) target = $region12
      $region11: #{_lambda_.1} parent=5 // pred_region
        %s230 = ssub.s32 %s17, 1
        // Predicated region
        $region13: #{_lambda_.1} parent=11 // pred_check
          %p231 = pneg %p64
        $region14: #{_lambda_.1} parent=11 // pred_check_branch
          %233 = sbr.rel (%p231) target = $region16
        $region15: #{_lambda_.1} parent=11 // pred_region
          _
        $region16: #{_lambda_.1} parent=11 // pred_fallthru
          _
        // Predicated region
        $region17: #{_lambda_.1} parent=11 // pred_check
          %p234 = pneg %p85
        $region18: #{_lambda_.1} parent=11 // pred_check_branch
          %236 = sbr.rel (%p234) target = $region20
        $region19: #{_lambda_.1} parent=11 // pred_region
          _
        $region20: #{_lambda_.1} parent=11 // pred_fallthru
          _
        // Predicated region
        $region21: #{_lambda_.1} parent=11 // pred_check
          %p237 = pneg %p106
        $region22: #{_lambda_.1} parent=11 // pred_check_branch
          %239 = sbr.rel (%p237) target = $region24
        $region23: #{_lambda_.1} parent=11 // pred_region
          _
        $region24: #{_lambda_.1} parent=11 // pred_fallthru
          _
        // Predicated region
        $region25: #{_lambda_.1} parent=11 // pred_check
          %p240 = pneg %p127
        $region26: #{_lambda_.1} parent=11 // pred_check_branch
          %242 = sbr.rel (%p240) target = $region28
        $region27: #{_lambda_.1} parent=11 // pred_region
          _
        $region28: #{_lambda_.1} parent=11 // pred_fallthru
          _
        // Predicated region
        $region29: #{_lambda_.1} parent=11 // pred_check
          %p243 = pneg %p148
        $region30: #{_lambda_.1} parent=11 // pred_check_branch
          %245 = sbr.rel (%p243) target = $region32
        $region31: #{_lambda_.1} parent=11 // pred_region
          _
        $region32: #{_lambda_.1} parent=11 // pred_fallthru
          _
        // Predicated region
        $region33: #{_lambda_.1} parent=11 // pred_check
          %p246 = pneg %p169
        $region34: #{_lambda_.1} parent=11 // pred_check_branch
          %248 = sbr.rel (%p246) target = $region36
        $region35: #{_lambda_.1} parent=11 // pred_region
          _
        $region36: #{_lambda_.1} parent=11 // pred_fallthru
          _
        // Predicated region
        $region37: #{_lambda_.1} parent=11 // pred_check
          %p249 = pneg %p190
        $region38: #{_lambda_.1} parent=11 // pred_check_branch
          %251 = sbr.rel (%p249) target = $region40
        $region39: #{_lambda_.1} parent=11 // pred_region
          _
        $region40: #{_lambda_.1} parent=11 // pred_fallthru
          _
      $region12: #{_lambda_.1} parent=5 // pred_fallthru
        _
      %p252 = scmp.lt.s32.totalorder %s17, 2
      // Predicated region
      $region41: #{_lambda_.1} parent=5 // pred_check
        %p253 = pneg %p252
      $region42: #{_lambda_.1} parent=5 // pred_check_branch
        %255 = sbr.rel (%p253) target = $region44
      $region43: #{_lambda_.1} parent=5 // pred_region
        // Predicated region
        $region45: #{_lambda_.1} parent=43 // pred_check
          %p256 = pneg %p37
        $region46: #{_lambda_.1} parent=43 // pred_check_branch
          %258 = sbr.rel (%p256) target = $region48
        $region47: #{_lambda_.1} parent=43 // pred_region
          %p259 = scmp.lt.s32.totalorder %s17, 1
          %s260 = scalar_select %p259, %s17, 1
          %s261 = smul.addr %s260, 8
          %s262 = smul.addr %s261, 8
          %s263 = scalar_lea.vmem %s0, %s262
        $region48: #{_lambda_.1} parent=43 // pred_fallthru
          _
      $region44: #{_lambda_.1} parent=5 // pred_fallthru
        _
      %p264 = scmp.le.s32.totalorder 1, %s17
      %p265 = scmp.lt.s32.totalorder %s17, 3
      %p266 = pnand %p264, %p265
      %p267 = pneg %p266
      // Predicated region
      $region49: #{_lambda_.1} parent=5 // pred_check
        _
      $region50: #{_lambda_.1} parent=5 // pred_check_branch
        %269 = sbr.rel (%p266) target = $region52
      $region51: #{_lambda_.1} parent=5 // pred_region
        %s270 = ssub.s32 %s17, 1
        %p271 = scmp.lt.s32.totalorder %s22, 1
        %s272 = scalar_select %p271, %s22, 1
        %s273 = smul.addr %s272, 8
        %s274 = smul.addr %s273, 8
        %s275 = scalar_lea.vmem %s0, %s274
        %p276 = pneg %p43
        %p277 = pneg %p40
        %p278 = pneg %p64
        %p279 = pneg %p61
        %p280 = pneg %p85
        %p281 = pneg %p82
        %p282 = pneg %p106
        %p283 = pneg %p103
        %p284 = pneg %p127
        %p285 = pneg %p124
        %p286 = pneg %p148
        %p287 = pneg %p145
        %p288 = pneg %p169
        %p289 = pneg %p166
        %p290 = pneg %p190
        %p291 = pneg %p187
        %p292 = pneg %p216
        %p293 = pneg %p213
        %s294 = sand.u32 %s203, 1
        %s295 = scalar_lea.sflag [#allocation4], %s294
        %s296 = sand.u32 %s203, 1
        %s297 = scalar_lea.vmem [#allocation3], %s296
        %p298 = scmp.lt.s32.totalorder %s22, 1
        %s299 = scalar_select %p298, %s22, 1
        %s300 = smul.addr %s299, 8
        %s301 = smul.addr %s300, 8
        %s302 = scalar_lea.vmem %s0, %s301
        %v304 = vld [vmem:[%s302] sm:$0xff]
        %v305 = vld [vmem:[%s302 + $0x8] sm:$0xff]
        %v306 = vld [vmem:[%s302 + $0x10] sm:$0xff]
        %v307 = vld [vmem:[%s302 + $0x18] sm:$0xff]
        %v308 = vld [vmem:[%s302 + $0x20] sm:$0xff]
        %v309 = vld [vmem:[%s302 + $0x28] sm:$0xff]
        %v310 = vld [vmem:[%s302 + $0x30] sm:$0xff]
        %v311 = vld [vmem:[%s302 + $0x38] sm:$0xff]
        %vm319 = vcmask 1046528
        %v320 = vrot.slane %v304, 1
        %v321 = vrot.slane %v305, 1
        %v322 = vsel %vm319, %v320, %v321
        %v323 = vrot.slane %v306, 1
        %v324 = vsel %vm319, %v321, %v323
        %v325 = vrot.slane %v307, 1
        %v326 = vsel %vm319, %v323, %v325
        %v327 = vrot.slane %v308, 1
        %v328 = vsel %vm319, %v325, %v327
        %v329 = vrot.slane %v309, 1
        %v330 = vsel %vm319, %v327, %v329
        %v331 = vrot.slane %v310, 1
        %v332 = vsel %vm319, %v329, %v331
        %333 = vrot.lane.b32.xlu0 %v322, 16
        %v334 = vpop.permute.xlu0 %333
        %335 = vrot.lane.b32.xlu0 %v324, 16
        %v336 = vpop.permute.xlu0 %335
        %337 = vrot.lane.b32.xlu0 %v326, 16
        %v338 = vpop.permute.xlu0 %337
        %339 = vrot.lane.b32.xlu0 %v328, 16
        %v340 = vpop.permute.xlu0 %339
        %341 = vrot.lane.b32.xlu0 %v330, 16
        %v342 = vpop.permute.xlu0 %341
        %343 = vrot.lane.b32.xlu0 %v332, 16
        %v344 = vpop.permute.xlu0 %343
        %345 = vrot.lane.b32.xlu0 %v331, 16
        %v346 = vpop.permute.xlu0 %345
        %355 = vrot.lane.b32.xlu0 %v305, 32
        %v356 = vpop.permute.xlu0 %355
        %357 = vrot.lane.b32.xlu0 %v306, 32
        %v358 = vpop.permute.xlu0 %357
        %359 = vrot.lane.b32.xlu0 %v307, 32
        %v360 = vpop.permute.xlu0 %359
        %361 = vrot.lane.b32.xlu0 %v308, 32
        %v362 = vpop.permute.xlu0 %361
        %363 = vrot.lane.b32.xlu0 %v309, 32
        %v364 = vpop.permute.xlu0 %363
        %365 = vrot.lane.b32.xlu0 %v310, 32
        %v366 = vpop.permute.xlu0 %365
        %367 = vrot.lane.b32.xlu0 %v311, 32
        %v368 = vpop.permute.xlu0 %367
        %v376 = vrot.slane %v311, 1
        %v377 = vsel %vm319, %v331, %v376
        %378 = vrot.lane.b32.xlu0 %v324, 48
        %v379 = vpop.permute.xlu0 %378
        %380 = vrot.lane.b32.xlu0 %v326, 48
        %v381 = vpop.permute.xlu0 %380
        %382 = vrot.lane.b32.xlu0 %v328, 48
        %v383 = vpop.permute.xlu0 %382
        %384 = vrot.lane.b32.xlu0 %v330, 48
        %v385 = vpop.permute.xlu0 %384
        %386 = vrot.lane.b32.xlu0 %v332, 48
        %v387 = vpop.permute.xlu0 %386
        %388 = vrot.lane.b32.xlu0 %v377, 48
        %v389 = vpop.permute.xlu0 %388
        %390 = vrot.lane.b32.xlu0 %v376, 48
        %v391 = vpop.permute.xlu0 %390
        %vm399 = vcmask 130048
        %v400 = vsel %vm399, %v304, %v334
        %v401 = vsel %vm399, %v305, %v336
        %v402 = vsel %vm399, %v306, %v338
        %v403 = vsel %vm399, %v307, %v340
        %v404 = vsel %vm399, %v308, %v342
        %v405 = vsel %vm399, %v309, %v344
        %v406 = vsel %vm399, %v310, %v346
        %vm407 = vcmask 261120
        %v408 = vsel %vm407, %v400, %v356
        %v409 = vsel %vm407, %v401, %v358
        %v410 = vsel %vm407, %v402, %v360
        %v411 = vsel %vm407, %v403, %v362
        %v412 = vsel %vm407, %v404, %v364
        %v413 = vsel %vm407, %v405, %v366
        %v414 = vsel %vm407, %v406, %v368
        %vm415 = vcmask 392192
        %v416 = vsel %vm415, %v408, %v379
        %v417 = vsel %vm415, %v409, %v381
        %v418 = vsel %vm415, %v410, %v383
        %v419 = vsel %vm415, %v411, %v385
        %v420 = vsel %vm415, %v412, %v387
        %v421 = vsel %vm415, %v413, %v389
        %v422 = vsel %vm415, %v414, %v391
        %v423 = vld [vmem:[%s1] sm:$0xff]
        %v424 = vld [vmem:[%s1 + $0x8] sm:$0xff]
        %v425 = vld [vmem:[%s1 + $0x10] sm:$0xff]
        %v426 = vld [vmem:[%s1 + $0x18] sm:$0xff]
        %v427 = vld [vmem:[%s1 + $0x20] sm:$0xff]
        %v428 = vld [vmem:[%s1 + $0x28] sm:$0xff]
        %v429 = vld [vmem:[%s1 + $0x30] sm:$0xff]
        %v430 = vld [vmem:[%s1 + $0x38] sm:$0xff]
        %v431 = vld [vmem:[%s1 + $0x40] sm:$0xff]
        %v432 = vld [vmem:[%s1 + $0x48] sm:$0xff]
        %v433 = vld [vmem:[%s1 + $0x50] sm:$0xff]
        %v434 = vld [vmem:[%s1 + $0x58] sm:$0xff]
        %v435 = vld [vmem:[%s1 + $0x60] sm:$0xff]
        %v436 = vld [vmem:[%s1 + $0x68] sm:$0xff]
        %v437 = vld [vmem:[%s1 + $0x70] sm:$0xff]
        %v438 = vld [vmem:[%s1 + $0x78] sm:$0xff]
        %vm439 = vcmask 523264
        %v441 = vsel %vm439, %v416, 0
        %v444 = vsel %vm439, %v417, 0
        %v447 = vsel %vm439, %v418, 0
        %v450 = vsel %vm439, %v419, 0
        %v453 = vsel %vm439, %v420, 0
        %v456 = vsel %vm439, %v421, 0
        %v459 = vsel %vm439, %v422, 0
        %461 = vmatprep.subr.mxu0 %v424
        %462 = vmatpush1.msra.mxu0 %v423
        %463 = vmatprep.subr.mxu0 %v426
        %464 = vmatpush1.msra.mxu0 %v425
        %465 = vmatprep.subr.mxu0 %v428
        %466 = vmatpush1.msra.mxu0 %v427
        %467 = vmatprep.subr.mxu0 %v430
        %468 = vmatpush1.msra.mxu0 %v429
        %469 = vmatprep.subr.mxu0 %v432
        %470 = vmatpush1.msra.mxu0 %v431
        %471 = vmatprep.subr.mxu0 %v434
        %472 = vmatpush1.msra.mxu0 %v433
        %473 = vmatprep.subr.mxu0 %v436
        %474 = vmatpush1.msra.mxu0 %v435
        %475 = vmatprep.subr.mxu0 %v438
        %476 = vmatpush1.msra.mxu0 %v437
        %477 = vmatprep.subr.mxu0 0.0
        %478 = vmatpush1.msra.mxu0 0.0
        %479 = vmatprep.subr.mxu0 0.0
        %480 = vmatpush1.msra.mxu0 0.0
        %481 = vmatprep.subr.mxu0 0.0
        %482 = vmatpush1.msra.mxu0 0.0
        %483 = vmatprep.subr.mxu0 0.0
        %484 = vmatpush1.msra.mxu0 0.0
        %485 = vmatprep.subr.mxu0 0.0
        %486 = vmatpush1.msra.mxu0 0.0
        %487 = vmatprep.subr.mxu0 0.0
        %488 = vmatpush1.msra.mxu0 0.0
        %489 = vmatprep.subr.mxu0 0.0
        %490 = vmatpush1.msra.mxu0 0.0
        %491 = vmatprep.subr.mxu0 0.0
        %492 = vmatpush1.msra.mxu0 0.0
        %493 = vmatprep.subr.mxu0 0.0
        %494 = vmatpush1.msra.mxu0 0.0
        %495 = vmatprep.subr.mxu0 0.0
        %496 = vmatpush1.msra.mxu0 0.0
        %497 = vmatprep.subr.mxu0 0.0
        %498 = vmatpush1.msra.mxu0 0.0
        %499 = vmatprep.subr.mxu0 0.0
        %500 = vmatpush1.msra.mxu0 0.0
        %501 = vmatprep.subr.mxu0 0.0
        %502 = vmatpush1.msra.mxu0 0.0
        %503 = vmatprep.subr.mxu0 0.0
        %504 = vmatpush1.msra.mxu0 0.0
        %505 = vmatprep.subr.mxu0 0.0
        %506 = vmatpush1.msra.mxu0 0.0
        %507 = vmatprep.subr.mxu0 0.0
        %508 = vmatpush1.msra.mxu0 0.0
        %509 = vmatprep.subr.mxu0 0.0
        %510 = vmatpush1.msra.mxu0 0.0
        %511 = vmatprep.subr.mxu0 0.0
        %512 = vmatpush1.msra.mxu0 0.0
        %513 = vmatprep.subr.mxu0 0.0
        %514 = vmatpush1.msra.mxu0 0.0
        %515 = vmatprep.subr.mxu0 0.0
        %516 = vmatpush1.msra.mxu0 0.0
        %517 = vmatprep.subr.mxu0 0.0
        %518 = vmatpush1.msra.mxu0 0.0
        %519 = vmatprep.subr.mxu0 0.0
        %520 = vmatpush1.msra.mxu0 0.0
        %521 = vmatprep.subr.mxu0 0.0
        %522 = vmatpush1.msra.mxu0 0.0
        %523 = vmatprep.subr.mxu0 0.0
        %524 = vmatpush1.msra.mxu0 0.0
        %525 = vmatprep.mubr.f32.mxu0 0.0
        %526 = vmatmul.mubr.f32.gmra.mrb[0].mxu0 %v441
        %v527 = vpop.f32.mrb[0].mxu0
        %v528 = vadd.f32 0.0, %v527
        %v529 = vpop.f32.mrb[0].mxu0
        %v530 = vadd.f32 0.0, %v529
        %531 = vmatprep.mubr.f32.mxu0 0.0
        %532 = vmatmul.mubr.f32.gmra.mrb[0].mxu0 %v444
        %v533 = vpop.f32.mrb[0].mxu0
        %v534 = vadd.f32 0.0, %v533
        %v535 = vpop.f32.mrb[0].mxu0
        %v536 = vadd.f32 0.0, %v535
        %537 = vmatprep.mubr.f32.mxu0 0.0
        %538 = vmatmul.mubr.f32.gmra.mrb[0].mxu0 %v447
        %v539 = vpop.f32.mrb[0].mxu0
        %v540 = vadd.f32 0.0, %v539
        %v541 = vpop.f32.mrb[0].mxu0
        %v542 = vadd.f32 0.0, %v541
        %543 = vmatprep.mubr.f32.mxu0 0.0
        %544 = vmatmul.mubr.f32.gmra.mrb[0].mxu0 %v450
        %v545 = vpop.f32.mrb[0].mxu0
        %v546 = vadd.f32 0.0, %v545
        %v547 = vpop.f32.mrb[0].mxu0
        %v548 = vadd.f32 0.0, %v547
        %549 = vmatprep.mubr.f32.mxu0 0.0
        %550 = vmatmul.mubr.f32.gmra.mrb[0].mxu0 %v453
        %v551 = vpop.f32.mrb[0].mxu0
        %v552 = vadd.f32 0.0, %v551
        %v553 = vpop.f32.mrb[0].mxu0
        %v554 = vadd.f32 0.0, %v553
        %555 = vmatprep.mubr.f32.mxu0 0.0
        %556 = vmatmul.mubr.f32.gmra.mrb[0].mxu0 %v456
        %v557 = vpop.f32.mrb[0].mxu0
        %v558 = vadd.f32 0.0, %v557
        %v559 = vpop.f32.mrb[0].mxu0
        %v560 = vadd.f32 0.0, %v559
        %561 = vmatprep.mubr.f32.mxu0 0.0
        %562 = vmatmul.mubr.f32.gmra.mrb[0].mxu0 %v459
        %v563 = vpop.f32.mrb[0].mxu0
        %v564 = vadd.f32 0.0, %v563
        %v565 = vpop.f32.mrb[0].mxu0
        %v566 = vadd.f32 0.0, %v565
        %567 = vdwg.mxu0
        %575 = vrot.lane.b32.xlu0 %v528, 64
        %v576 = vpop.permute.xlu0 %575
        %577 = vrot.lane.b32.xlu0 %v534, 64
        %v578 = vpop.permute.xlu0 %577
        %579 = vrot.lane.b32.xlu0 %v540, 64
        %v580 = vpop.permute.xlu0 %579
        %581 = vrot.lane.b32.xlu0 %v546, 64
        %v582 = vpop.permute.xlu0 %581
        %583 = vrot.lane.b32.xlu0 %v552, 64
        %v584 = vpop.permute.xlu0 %583
        %585 = vrot.lane.b32.xlu0 %v558, 64
        %v586 = vpop.permute.xlu0 %585
        %587 = vrot.lane.b32.xlu0 %v564, 64
        %v588 = vpop.permute.xlu0 %587
        %v596 = vmax.f32 %v528, %v576
        %v597 = vmax.f32 %v534, %v578
        %v598 = vmax.f32 %v540, %v580
        %v599 = vmax.f32 %v546, %v582
        %v600 = vmax.f32 %v552, %v584
        %v601 = vmax.f32 %v558, %v586
        %v602 = vmax.f32 %v564, %v588
        %610 = vrot.lane.b32.xlu0 %v530, 64
        %v611 = vpop.permute.xlu0 %610
        %612 = vrot.lane.b32.xlu0 %v536, 64
        %v613 = vpop.permute.xlu0 %612
        %614 = vrot.lane.b32.xlu0 %v542, 64
        %v615 = vpop.permute.xlu0 %614
        %616 = vrot.lane.b32.xlu0 %v548, 64
        %v617 = vpop.permute.xlu0 %616
        %618 = vrot.lane.b32.xlu0 %v554, 64
        %v619 = vpop.permute.xlu0 %618
        %620 = vrot.lane.b32.xlu0 %v560, 64
        %v621 = vpop.permute.xlu0 %620
        %622 = vrot.lane.b32.xlu0 %v566, 64
        %v623 = vpop.permute.xlu0 %622
        %v631 = vmax.f32 %v530, %v611
        %v632 = vmax.f32 %v536, %v613
        %v633 = vmax.f32 %v542, %v615
        %v634 = vmax.f32 %v548, %v617
        %v635 = vmax.f32 %v554, %v619
        %v636 = vmax.f32 %v560, %v621
        %v637 = vmax.f32 %v566, %v623
        %v638 = vmax.f32 %v596, %v631
        %v639 = vmax.f32 %v597, %v632
        %v640 = vmax.f32 %v598, %v633
        %v641 = vmax.f32 %v599, %v634
        %v642 = vmax.f32 %v600, %v635
        %v643 = vmax.f32 %v601, %v636
        %v644 = vmax.f32 %v602, %v637
        %v645 = vld [vmem:[%s2] sm:$0x1]
        %v647 = vlaneseq
        %v648 = vshrl.u32 %v647, 7
        %v649 = vsub.s32 0, %v648
        %v650 = vrot.slane %v645, %v649
        %v652 = vadd.f32 %v638, %v650
        %v653 = vadd.f32 %v639, %v650
        %v654 = vadd.f32 %v640, %v650
        %v655 = vadd.f32 %v641, %v650
        %v656 = vadd.f32 %v642, %v650
        %v657 = vadd.f32 %v643, %v650
        %v658 = vadd.f32 %v644, %v650
        %v659 = vmax.f32 %v652, 0.0
        %v660 = vmax.f32 %v653, 0.0
        %v661 = vmax.f32 %v654, 0.0
        %v662 = vmax.f32 %v655, 0.0
        %v663 = vmax.f32 %v656, 0.0
        %v664 = vmax.f32 %v657, 0.0
        %v665 = vmax.f32 %v658, 0.0
        %666 = vst.msk [vmem:[#allocation2] sm:$0xff] %vm439, 0.0
        %667 = vst.msk [vmem:[#allocation2 + $0x8] sm:$0xff] %vm439, 0.0
        %668 = vst.msk [vmem:[#allocation2 + $0x10] sm:$0xff] %vm439, 0.0
        %669 = vst.msk [vmem:[#allocation2 + $0x18] sm:$0xff] %vm439, 0.0
        %670 = vst.msk [vmem:[#allocation2 + $0x20] sm:$0xff] %vm439, 0.0
        %671 = vst.msk [vmem:[#allocation2 + $0x28] sm:$0xff] %vm439, 0.0
        %672 = vst.msk [vmem:[#allocation2 + $0x30] sm:$0xff] %vm439, 0.0
        %673 = vst.msk [vmem:[#allocation2 + $0x38] sm:$0xff] %vm439, 0.0
        %674 = vst.msk [vmem:[#allocation2 + $0x40] sm:$0xff] %vm439, 0.0
        %675 = vst.msk [vmem:[#allocation2 + $0x48] sm:$0xff] %vm439, 0.0
        %vm676 = vcmask 516096
        %677 = vst.msk [vmem:[#allocation2 + $0x50] sm:$0x1] %vm676, 0.0
        %vm678 = vcmask 522240
        %679 = vst.msk [vmem:[#allocation2 + $0xa] sm:$0x7f] %vm678, %v659
        %680 = vst.msk [vmem:[#allocation2 + $0x13] sm:$0x7f] %vm678, %v660
        %681 = vst.msk [vmem:[#allocation2 + $0x1c] sm:$0x7f] %vm678, %v661
        %682 = vst.msk [vmem:[#allocation2 + $0x25] sm:$0x7f] %vm678, %v662
        %683 = vst.msk [vmem:[#allocation2 + $0x2e] sm:$0x7f] %vm678, %v663
        %684 = vst.msk [vmem:[#allocation2 + $0x37] sm:$0x7f] %vm678, %v664
        %685 = vst.msk [vmem:[#allocation2 + $0x40] sm:$0x7f] %vm678, %v665
        %v686 = vld [vmem:[#allocation2] sm:$0xff]
        %v687 = vld [vmem:[#allocation2 + $0x8] sm:$0xff]
        %v688 = vld [vmem:[#allocation2 + $0x10] sm:$0xff]
        %v689 = vld [vmem:[#allocation2 + $0x18] sm:$0xff]
        %v690 = vld [vmem:[#allocation2 + $0x20] sm:$0xff]
        %v691 = vld [vmem:[#allocation2 + $0x28] sm:$0xff]
        %v692 = vld [vmem:[#allocation2 + $0x30] sm:$0xff]
        %v693 = vld [vmem:[#allocation2 + $0x38] sm:$0xff]
        %v694 = vld [vmem:[#allocation2 + $0x40] sm:$0xff]
        %v695 = vld [vmem:[#allocation2 + $0x48] sm:$0xff]
        %v696 = vld [vmem:[#allocation2 + $0x50] sm:$0x1]
        %v705 = vrot.slane %v686, 1
        %v706 = vrot.slane %v687, 1
        %v707 = vsel %vm319, %v705, %v706
        %v708 = vrot.slane %v688, 1
        %v709 = vsel %vm319, %v706, %v708
        %v710 = vrot.slane %v689, 1
        %v711 = vsel %vm319, %v708, %v710
        %v712 = vrot.slane %v690, 1
        %v713 = vsel %vm319, %v710, %v712
        %v714 = vrot.slane %v691, 1
        %v715 = vsel %vm319, %v712, %v714
        %v716 = vrot.slane %v692, 1
        %v717 = vsel %vm319, %v714, %v716
        %v718 = vrot.slane %v693, 1
        %v719 = vsel %vm319, %v716, %v718
        %720 = vrot.lane.b32.xlu0 %v707, 64
        %v721 = vpop.permute.xlu0 %720
        %722 = vrot.lane.b32.xlu0 %v709, 64
        %v723 = vpop.permute.xlu0 %722
        %724 = vrot.lane.b32.xlu0 %v711, 64
        %v725 = vpop.permute.xlu0 %724
        %726 = vrot.lane.b32.xlu0 %v713, 64
        %v727 = vpop.permute.xlu0 %726
        %728 = vrot.lane.b32.xlu0 %v715, 64
        %v729 = vpop.permute.xlu0 %728
        %730 = vrot.lane.b32.xlu0 %v717, 64
        %v731 = vpop.permute.xlu0 %730
        %732 = vrot.lane.b32.xlu0 %v719, 64
        %v733 = vpop.permute.xlu0 %732
        %734 = vrot.lane.b32.xlu0 %v718, 64
        %v735 = vpop.permute.xlu0 %734
        %vm744 = vcmask 1045504
        %v745 = vrot.slane %v686, 2
        %v746 = vrot.slane %v687, 2
        %v747 = vsel %vm744, %v745, %v746
        %v748 = vrot.slane %v688, 2
        %v749 = vsel %vm744, %v746, %v748
        %v750 = vrot.slane %v689, 2
        %v751 = vsel %vm744, %v748, %v750
        %v752 = vrot.slane %v690, 2
        %v753 = vsel %vm744, %v750, %v752
        %v754 = vrot.slane %v691, 2
        %v755 = vsel %vm744, %v752, %v754
        %v756 = vrot.slane %v692, 2
        %v757 = vsel %vm744, %v754, %v756
        %v758 = vrot.slane %v693, 2
        %v759 = vsel %vm744, %v756, %v758
        %v769 = vrot.slane %v694, 1
        %v770 = vsel %vm319, %v718, %v769
        %771 = vrot.lane.b32.xlu0 %v770, 64
        %v772 = vpop.permute.xlu0 %771
        %773 = vrot.lane.b32.xlu0 %v769, 64
        %v774 = vpop.permute.xlu0 %773
        %v777 = vrot.slane %v694, 2
        %v778 = vsel %vm744, %v758, %v777
        %vm781 = vcmask 1044480
        %v782 = vrot.slane %v687, 3
        %v783 = vrot.slane %v688, 3
        %v784 = vsel %vm781, %v782, %v783
        %v785 = vrot.slane %v689, 3
        %v786 = vsel %vm781, %v783, %v785
        %v787 = vrot.slane %v690, 3
        %v788 = vsel %vm781, %v785, %v787
        %v789 = vrot.slane %v691, 3
        %v790 = vsel %vm781, %v787, %v789
        %v791 = vrot.slane %v692, 3
        %v792 = vsel %vm781, %v789, %v791
        %v793 = vrot.slane %v693, 3
        %v794 = vsel %vm781, %v791, %v793
        %v795 = vrot.slane %v694, 3
        %v796 = vsel %vm781, %v793, %v795
        %797 = vrot.lane.b32.xlu0 %v784, 64
        %v798 = vpop.permute.xlu0 %797
        %799 = vrot.lane.b32.xlu0 %v786, 64
        %v800 = vpop.permute.xlu0 %799
        %801 = vrot.lane.b32.xlu0 %v788, 64
        %v802 = vpop.permute.xlu0 %801
        %803 = vrot.lane.b32.xlu0 %v790, 64
        %v804 = vpop.permute.xlu0 %803
        %805 = vrot.lane.b32.xlu0 %v792, 64
        %v806 = vpop.permute.xlu0 %805
        %807 = vrot.lane.b32.xlu0 %v794, 64
        %v808 = vpop.permute.xlu0 %807
        %809 = vrot.lane.b32.xlu0 %v796, 64
        %v810 = vpop.permute.xlu0 %809
        %811 = vrot.lane.b32.xlu0 %v795, 64
        %v812 = vpop.permute.xlu0 %811
        %v822 = vrot.slane %v695, 2
        %v823 = vsel %vm744, %v777, %v822
        %v826 = vrot.slane %v695, 3
        %v827 = vsel %vm781, %v795, %v826
        %828 = vrot.lane.b32.xlu0 %v827, 64
        %v829 = vpop.permute.xlu0 %828
        %830 = vrot.lane.b32.xlu0 %v826, 64
        %v831 = vpop.permute.xlu0 %830
        %vm835 = vcmask 1043456
        %v836 = vrot.slane %v688, 4
        %v837 = vrot.slane %v689, 4
        %v838 = vsel %vm835, %v836, %v837
        %v839 = vrot.slane %v690, 4
        %v840 = vsel %vm835, %v837, %v839
        %v841 = vrot.slane %v691, 4
        %v842 = vsel %vm835, %v839, %v841
        %v843 = vrot.slane %v692, 4
        %v844 = vsel %vm835, %v841, %v843
        %v845 = vrot.slane %v693, 4
        %v846 = vsel %vm835, %v843, %v845
        %v847 = vrot.slane %v694, 4
        %v848 = vsel %vm835, %v845, %v847
        %v849 = vrot.slane %v695, 4
        %v850 = vsel %vm835, %v847, %v849
        %v851 = vrot.slane %v696, 4
        %v852 = vsel %vm835, %v849, %v851
        %v861 = vsel %vm439, %v686, %v721
        %v862 = vsel %vm439, %v687, %v723
        %v863 = vsel %vm439, %v688, %v725
        %v864 = vsel %vm439, %v689, %v727
        %v865 = vsel %vm439, %v690, %v729
        %v866 = vsel %vm439, %v691, %v731
        %v867 = vsel %vm439, %v692, %v733
        %v868 = vsel %vm439, %v693, %v735
        %v869 = vsel %vm439, %v747, %v723
        %v870 = vsel %vm439, %v749, %v725
        %v871 = vsel %vm439, %v751, %v727
        %v872 = vsel %vm439, %v753, %v729
        %v873 = vsel %vm439, %v755, %v731
        %v874 = vsel %vm439, %v757, %v733
        %v875 = vsel %vm439, %v759, %v772
        %v876 = vsel %vm439, %v758, %v774
        %v877 = vsel %vm439, %v749, %v798
        %v878 = vsel %vm439, %v751, %v800
        %v879 = vsel %vm439, %v753, %v802
        %v880 = vsel %vm439, %v755, %v804
        %v881 = vsel %vm439, %v757, %v806
        %v882 = vsel %vm439, %v759, %v808
        %v883 = vsel %vm439, %v778, %v810
        %v884 = vsel %vm439, %v777, %v812
        %v885 = vsel %vm439, %v823, %v829
        %v886 = vsel %vm439, %v822, %v831
        %v887 = vpack.c.bf16 %v862, %v861
        %v888 = vpack.c.bf16 %v870, %v869
        %v889 = vpack.c.bf16 %v878, %v877
        %v890 = vpack.c.bf16 %v879, %v878
        %v891 = vpack.c.bf16 %v840, %v838
        %v892 = vpack.c.bf16 %v864, %v863
        %v893 = vpack.c.bf16 %v872, %v871
        %v894 = vpack.c.bf16 %v880, %v879
        %v895 = vpack.c.bf16 %v881, %v880
        %v896 = vpack.c.bf16 %v844, %v842
        %v897 = vpack.c.bf16 %v866, %v865
        %v898 = vpack.c.bf16 %v874, %v873
        %v899 = vpack.c.bf16 %v882, %v881
        %v900 = vpack.c.bf16 %v883, %v882
        %v901 = vpack.c.bf16 %v848, %v846
        %v902 = vpack.c.bf16 %v868, %v867
        %v903 = vpack.c.bf16 %v876, %v875
        %v904 = vpack.c.bf16 %v884, %v883
        %v905 = vpack.c.bf16 %v886, %v885
        %v906 = vpack.c.bf16 %v852, %v850
        %v907 = vld [vmem:[%s3] sm:$0xf]
        %v908 = vld [vmem:[%s3 + $0x4] sm:$0xf]
        %v909 = vld [vmem:[%s3 + $0x8] sm:$0xf]
        %v910 = vld [vmem:[%s3 + $0xc] sm:$0xf]
        %v911 = vld [vmem:[%s3 + $0x10] sm:$0xf]
        %v912 = vld [vmem:[%s3 + $0x14] sm:$0xf]
        %v913 = vld [vmem:[%s3 + $0x18] sm:$0xf]
        %v914 = vld [vmem:[%s3 + $0x1c] sm:$0xf]
        %v915 = vld [vmem:[%s3 + $0x20] sm:$0xf]
        %v916 = vld [vmem:[%s3 + $0x24] sm:$0xf]
        %v917 = vld [vmem:[%s3 + $0x28] sm:$0xf]
        %v918 = vld [vmem:[%s3 + $0x2c] sm:$0xf]
        %v919 = vld [vmem:[%s3 + $0x30] sm:$0xf]
        %v920 = vld [vmem:[%s3 + $0x34] sm:$0xf]
        %v921 = vld [vmem:[%s3 + $0x38] sm:$0xf]
        %v922 = vld [vmem:[%s3 + $0x3c] sm:$0xf]
        %v923 = vld [vmem:[%s3 + $0x40] sm:$0xf]
        %v924 = vld [vmem:[%s3 + $0x44] sm:$0xf]
        %v925 = vld [vmem:[%s3 + $0x48] sm:$0xf]
        %v926 = vld [vmem:[%s3 + $0x4c] sm:$0xf]
        %v927 = vld [vmem:[%s3 + $0x50] sm:$0xf]
        %v928 = vld [vmem:[%s3 + $0x54] sm:$0xf]
        %v929 = vld [vmem:[%s3 + $0x58] sm:$0xf]
        %v930 = vld [vmem:[%s3 + $0x5c] sm:$0xf]
        %v931 = vld [vmem:[%s3 + $0x60] sm:$0xf]
        %v932 = vld [vmem:[%s3 + $0x64] sm:$0xf]
        %v933 = vld [vmem:[%s3 + $0x68] sm:$0xf]
        %v934 = vld [vmem:[%s3 + $0x6c] sm:$0xf]
        %v935 = vld [vmem:[%s3 + $0x70] sm:$0xf]
        %v936 = vld [vmem:[%s3 + $0x74] sm:$0xf]
        %v937 = vld [vmem:[%s3 + $0x78] sm:$0xf]
        %v938 = vld [vmem:[%s3 + $0x7c] sm:$0xf]
        %v939 = vld [vmem:[%s3 + $0x80] sm:$0xf]
        %v940 = vld [vmem:[%s3 + $0x84] sm:$0xf]
        %v941 = vld [vmem:[%s3 + $0x88] sm:$0xf]
        %v942 = vld [vmem:[%s3 + $0x8c] sm:$0xf]
        %v943 = vld [vmem:[%s3 + $0x90] sm:$0xf]
        %v944 = vld [vmem:[%s3 + $0x94] sm:$0xf]
        %v945 = vld [vmem:[%s3 + $0x98] sm:$0xf]
        %v946 = vld [vmem:[%s3 + $0x9c] sm:$0xf]
        %v947 = vld [vmem:[%s3 + $0xa0] sm:$0xf]
        %v948 = vld [vmem:[%s3 + $0xa4] sm:$0xf]
        %v949 = vld [vmem:[%s3 + $0xa8] sm:$0xf]
        %v950 = vld [vmem:[%s3 + $0xac] sm:$0xf]
        %v951 = vld [vmem:[%s3 + $0xb0] sm:$0xf]
        %v952 = vld [vmem:[%s3 + $0xb4] sm:$0xf]
        %v953 = vld [vmem:[%s3 + $0xb8] sm:$0xf]
        %v954 = vld [vmem:[%s3 + $0xbc] sm:$0xf]
        %v955 = vld [vmem:[%s3 + $0xc0] sm:$0xf]
        %v956 = vld [vmem:[%s3 + $0xc4] sm:$0xf]
        %v957 = vld [vmem:[%s3 + $0xc8] sm:$0xf]
        %v958 = vld [vmem:[%s3 + $0xcc] sm:$0xf]
        %v959 = vld [vmem:[%s3 + $0xd0] sm:$0xf]
        %v960 = vld [vmem:[%s3 + $0xd4] sm:$0xf]
        %v961 = vld [vmem:[%s3 + $0xd8] sm:$0xf]
        %v962 = vld [vmem:[%s3 + $0xdc] sm:$0xf]
        %v963 = vld [vmem:[%s3 + $0xe0] sm:$0xf]
        %v964 = vld [vmem:[%s3 + $0xe4] sm:$0xf]
        %v965 = vld [vmem:[%s3 + $0xe8] sm:$0xf]
        %v966 = vld [vmem:[%s3 + $0xec] sm:$0xf]
        %v967 = vld [vmem:[%s3 + $0xf0] sm:$0xf]
        %v968 = vld [vmem:[%s3 + $0xf4] sm:$0xf]
        %v969 = vld [vmem:[%s3 + $0xf8] sm:$0xf]
        %v970 = vld [vmem:[%s3 + $0xfc] sm:$0xf]
        %v971 = vld [vmem:[%s3 + $0x100] sm:$0xf]
        %v972 = vld [vmem:[%s3 + $0x104] sm:$0xf]
        %v973 = vld [vmem:[%s3 + $0x108] sm:$0xf]
        %v974 = vld [vmem:[%s3 + $0x10c] sm:$0xf]
        %v975 = vld [vmem:[%s3 + $0x110] sm:$0xf]
        %v976 = vld [vmem:[%s3 + $0x114] sm:$0xf]
        %v977 = vld [vmem:[%s3 + $0x118] sm:$0xf]
        %v978 = vld [vmem:[%s3 + $0x11c] sm:$0xf]
        %v1051 = vunpack.c.l.b16 %v907
        %v1052 = vunpack.c.l.b16 %v908
        %v1053 = vunpack.c.l.b16 %v909
        %v1054 = vunpack.c.l.b16 %v910
        %v1055 = vunpack.c.l.b16 %v911
        %v1056 = vunpack.c.l.b16 %v912
        %v1057 = vunpack.c.l.b16 %v913
        %v1058 = vunpack.c.l.b16 %v914
        %v1059 = vunpack.c.l.b16 %v915
        %v1060 = vunpack.c.l.b16 %v916
        %v1061 = vunpack.c.l.b16 %v917
        %v1062 = vunpack.c.l.b16 %v918
        %v1063 = vunpack.c.l.b16 %v919
        %v1064 = vunpack.c.l.b16 %v920
        %v1065 = vunpack.c.l.b16 %v921
        %v1066 = vunpack.c.l.b16 %v922
        %v1067 = vunpack.c.l.b16 %v923
        %v1068 = vunpack.c.l.b16 %v924
        %v1069 = vunpack.c.l.b16 %v925
        %v1070 = vunpack.c.l.b16 %v926
        %v1071 = vunpack.c.l.b16 %v927
        %v1072 = vunpack.c.l.b16 %v928
        %v1073 = vunpack.c.l.b16 %v929
        %v1074 = vunpack.c.l.b16 %v930
        %v1075 = vunpack.c.l.b16 %v931
        %v1076 = vunpack.c.l.b16 %v932
        %v1077 = vunpack.c.l.b16 %v933
        %v1078 = vunpack.c.l.b16 %v934
        %v1079 = vunpack.c.l.b16 %v935
        %v1080 = vunpack.c.l.b16 %v936
        %v1081 = vunpack.c.l.b16 %v937
        %v1082 = vunpack.c.l.b16 %v938
        %v1083 = vunpack.c.l.b16 %v939
        %v1084 = vunpack.c.l.b16 %v940
        %v1085 = vunpack.c.l.b16 %v941
        %v1086 = vunpack.c.l.b16 %v942
        %v1087 = vunpack.c.l.b16 %v943
        %v1088 = vunpack.c.l.b16 %v944
        %v1089 = vunpack.c.l.b16 %v945
        %v1090 = vunpack.c.l.b16 %v946
        %v1091 = vunpack.c.l.b16 %v947
        %v1092 = vunpack.c.l.b16 %v948
        %v1093 = vunpack.c.l.b16 %v949
        %v1094 = vunpack.c.l.b16 %v950
        %v1095 = vunpack.c.l.b16 %v951
        %v1096 = vunpack.c.l.b16 %v952
        %v1097 = vunpack.c.l.b16 %v953
        %v1098 = vunpack.c.l.b16 %v954
        %v1099 = vunpack.c.l.b16 %v955
        %v1100 = vunpack.c.l.b16 %v956
        %v1101 = vunpack.c.l.b16 %v957
        %v1102 = vunpack.c.l.b16 %v958
        %v1103 = vunpack.c.l.b16 %v959
        %v1104 = vunpack.c.l.b16 %v960
        %v1105 = vunpack.c.l.b16 %v961
        %v1106 = vunpack.c.l.b16 %v962
        %v1107 = vunpack.c.l.b16 %v963
        %v1108 = vunpack.c.l.b16 %v964
        %v1109 = vunpack.c.l.b16 %v965
        %v1110 = vunpack.c.l.b16 %v966
        %v1111 = vunpack.c.l.b16 %v967
        %v1112 = vunpack.c.l.b16 %v968
        %v1113 = vunpack.c.l.b16 %v969
        %v1114 = vunpack.c.l.b16 %v970
        %v1115 = vunpack.c.l.b16 %v971
        %v1116 = vunpack.c.l.b16 %v972
        %v1117 = vunpack.c.l.b16 %v973
        %v1118 = vunpack.c.l.b16 %v974
        %v1119 = vunpack.c.l.b16 %v975
        %v1120 = vunpack.c.l.b16 %v976
        %v1121 = vunpack.c.l.b16 %v977
        %v1122 = vunpack.c.l.b16 %v978
        %v1123 = vpack.c.b16 %v1052, %v1051
        %v1124 = vpack.c.b16 %v1054, %v1053
        %v1125 = vpack.c.b16 %v1056, %v1055
        %v1126 = vpack.c.b16 %v1058, %v1057
        %v1127 = vpack.c.b16 %v1060, %v1059
        %v1128 = vpack.c.b16 %v1062, %v1061
        %v1129 = vpack.c.b16 %v1064, %v1063
        %v1130 = vpack.c.b16 %v1066, %v1065
        %v1131 = vpack.c.b16 %v1068, %v1067
        %v1132 = vpack.c.b16 %v1070, %v1069
        %v1133 = vpack.c.b16 %v1072, %v1071
        %v1134 = vpack.c.b16 %v1074, %v1073
        %v1135 = vpack.c.b16 %v1076, %v1075
        %v1136 = vpack.c.b16 %v1078, %v1077
        %v1137 = vpack.c.b16 %v1080, %v1079
        %v1138 = vpack.c.b16 %v1082, %v1081
        %v1139 = vpack.c.b16 %v1084, %v1083
        %v1140 = vpack.c.b16 %v1086, %v1085
        %v1141 = vpack.c.b16 %v1088, %v1087
        %v1142 = vpack.c.b16 %v1090, %v1089
        %v1143 = vpack.c.b16 %v1092, %v1091
        %v1144 = vpack.c.b16 %v1094, %v1093
        %v1145 = vpack.c.b16 %v1096, %v1095
        %v1146 = vpack.c.b16 %v1098, %v1097
        %v1147 = vpack.c.b16 %v1100, %v1099
        %v1148 = vpack.c.b16 %v1102, %v1101
        %v1149 = vpack.c.b16 %v1104, %v1103
        %v1150 = vpack.c.b16 %v1106, %v1105
        %v1151 = vpack.c.b16 %v1108, %v1107
        %v1152 = vpack.c.b16 %v1110, %v1109
        %v1153 = vpack.c.b16 %v1112, %v1111
        %v1154 = vpack.c.b16 %v1114, %v1113
        %v1155 = vpack.c.b16 %v1116, %v1115
        %v1156 = vpack.c.b16 %v1118, %v1117
        %v1157 = vpack.c.b16 %v1120, %v1119
        %v1158 = vpack.c.b16 %v1122, %v1121
        %v1196 = vsel %vm439, %v891, 0
        %v1199 = vsel %vm439, %v896, 0
        %v1202 = vsel %vm439, %v901, 0
        %v1205 = vsel %vm439, %v906, 0
        %1207 = vmatprep.subr.bf16.mxu0 0
        %1208 = vmatpush1.bf16.msra.mxu0 %v1123
        %1209 = vmatprep.subr.bf16.mxu0 0
        %1210 = vmatpush1.bf16.msra.mxu0 %v1124
        %1211 = vmatprep.subr.bf16.mxu0 0
        %1212 = vmatpush1.bf16.msra.mxu0 %v1125
        %1213 = vmatprep.subr.bf16.mxu0 0
        %1214 = vmatpush1.bf16.msra.mxu0 %v1126
        %1215 = vmatprep.subr.bf16.mxu0 0
        %1216 = vmatpush1.bf16.msra.mxu0 %v1127
        %1217 = vmatprep.subr.bf16.mxu0 0
        %1218 = vmatpush1.bf16.msra.mxu0 %v1128
        %1219 = vmatprep.subr.bf16.mxu0 0
        %1220 = vmatpush1.bf16.msra.mxu0 %v1129
        %1221 = vmatprep.subr.bf16.mxu0 0
        %1222 = vmatpush1.bf16.msra.mxu0 %v1130
        %1223 = vmatprep.subr.bf16.mxu0 0
        %1224 = vmatpush1.bf16.msra.mxu0 %v1131
        %1225 = vmatprep.subr.bf16.mxu0 0
        %1226 = vmatpush1.bf16.msra.mxu0 %v1132
        %1227 = vmatprep.subr.bf16.mxu0 0
        %1228 = vmatpush1.bf16.msra.mxu0 %v1133
        %1229 = vmatprep.subr.bf16.mxu0 0
        %1230 = vmatpush1.bf16.msra.mxu0 %v1134
        %1231 = vmatprep.subr.bf16.mxu0 0
        %1232 = vmatpush1.bf16.msra.mxu0 %v1135
        %1233 = vmatprep.subr.bf16.mxu0 0
        %1234 = vmatpush1.bf16.msra.mxu0 %v1136
        %1235 = vmatprep.subr.bf16.mxu0 0
        %1236 = vmatpush1.bf16.msra.mxu0 %v1137
        %1237 = vmatprep.subr.bf16.mxu0 0
        %1238 = vmatpush1.bf16.msra.mxu0 %v1138
        %1239 = vmatprep.mubr.bf16.mxu0 %v888
        %1240 = vmatmul.mubr.bf16.gmra.mrb[0].mxu0 %v887
        %v1241 = vpop.f32.mrb[0].mxu0
        %v1242 = vadd.f32 0.0, %v1241
        %v1243 = vpop.f32.mrb[0].mxu0
        %v1244 = vpop.f32.mrb[0].mxu0
        %v1245 = vadd.f32 0.0, %v1244
        %v1246 = vpop.f32.mrb[0].mxu0
        %1247 = vmatprep.mubr.bf16.mxu0 %v893
        %1248 = vmatmul.mubr.bf16.gmra.mrb[0].mxu0 %v892
        %v1249 = vpop.f32.mrb[0].mxu0
        %v1250 = vadd.f32 0.0, %v1249
        %v1251 = vpop.f32.mrb[0].mxu0
        %v1252 = vpop.f32.mrb[0].mxu0
        %v1253 = vadd.f32 0.0, %v1252
        %v1254 = vpop.f32.mrb[0].mxu0
        %1255 = vmatprep.mubr.bf16.mxu0 %v898
        %1256 = vmatmul.mubr.bf16.gmra.mrb[0].mxu0 %v897
        %v1257 = vpop.f32.mrb[0].mxu0
        %v1258 = vadd.f32 0.0, %v1257
        %v1259 = vpop.f32.mrb[0].mxu0
        %v1260 = vpop.f32.mrb[0].mxu0
        %v1261 = vadd.f32 0.0, %v1260
        %v1262 = vpop.f32.mrb[0].mxu0
        %1263 = vmatprep.mubr.bf16.mxu0 %v903
        %1264 = vmatmul.mubr.bf16.gmra.mrb[0].mxu0 %v902
        %v1265 = vpop.f32.mrb[0].mxu0
        %v1266 = vadd.f32 0.0, %v1265
        %v1267 = vpop.f32.mrb[0].mxu0
        %v1268 = vpop.f32.mrb[0].mxu0
        %v1269 = vadd.f32 0.0, %v1268
        %v1270 = vpop.f32.mrb[0].mxu0
        %1271 = vdwg.mxu0
        %1272 = vmatprep.subr.bf16.mxu0 0
        %1273 = vmatpush1.bf16.msra.mxu0 %v1139
        %1274 = vmatprep.subr.bf16.mxu0 0
        %1275 = vmatpush1.bf16.msra.mxu0 %v1140
        %1276 = vmatprep.subr.bf16.mxu0 0
        %1277 = vmatpush1.bf16.msra.mxu0 %v1141
        %1278 = vmatprep.subr.bf16.mxu0 0
        %1279 = vmatpush1.bf16.msra.mxu0 %v1142
        %1280 = vmatprep.subr.bf16.mxu0 0
        %1281 = vmatpush1.bf16.msra.mxu0 %v1143
        %1282 = vmatprep.subr.bf16.mxu0 0
        %1283 = vmatpush1.bf16.msra.mxu0 %v1144
        %1284 = vmatprep.subr.bf16.mxu0 0
        %1285 = vmatpush1.bf16.msra.mxu0 %v1145
        %1286 = vmatprep.subr.bf16.mxu0 0
        %1287 = vmatpush1.bf16.msra.mxu0 %v1146
        %1288 = vmatprep.subr.bf16.mxu0 0
        %1289 = vmatpush1.bf16.msra.mxu0 %v1147
        %1290 = vmatprep.subr.bf16.mxu0 0
        %1291 = vmatpush1.bf16.msra.mxu0 %v1148
        %1292 = vmatprep.subr.bf16.mxu0 0
        %1293 = vmatpush1.bf16.msra.mxu0 %v1149
        %1294 = vmatprep.subr.bf16.mxu0 0
        %1295 = vmatpush1.bf16.msra.mxu0 %v1150
        %1296 = vmatprep.subr.bf16.mxu0 0
        %1297 = vmatpush1.bf16.msra.mxu0 %v1151
        %1298 = vmatprep.subr.bf16.mxu0 0
        %1299 = vmatpush1.bf16.msra.mxu0 %v1152
        %1300 = vmatprep.subr.bf16.mxu0 0
        %1301 = vmatpush1.bf16.msra.mxu0 %v1153
        %1302 = vmatprep.subr.bf16.mxu0 0
        %1303 = vmatpush1.bf16.msra.mxu0 %v1154
        %1304 = vmatprep.mubr.bf16.mxu0 %v890
        %1305 = vmatmul.mubr.bf16.gmra.mrb[0].mxu0 %v889
        %v1306 = vpop.f32.mrb[0].mxu0
        %v1307 = vadd.f32 %v1242, %v1306
        %v1308 = vpop.f32.mrb[0].mxu0
        %v1309 = vpop.f32.mrb[0].mxu0
        %v1310 = vadd.f32 %v1245, %v1309
        %v1311 = vpop.f32.mrb[0].mxu0
        %1312 = vmatprep.mubr.bf16.mxu0 %v895
        %1313 = vmatmul.mubr.bf16.gmra.mrb[0].mxu0 %v894
        %v1314 = vpop.f32.mrb[0].mxu0
        %v1315 = vadd.f32 %v1250, %v1314
        %v1316 = vpop.f32.mrb[0].mxu0
        %v1317 = vpop.f32.mrb[0].mxu0
        %v1318 = vadd.f32 %v1253, %v1317
        %v1319 = vpop.f32.mrb[0].mxu0
        %1320 = vmatprep.mubr.bf16.mxu0 %v900
        %1321 = vmatmul.mubr.bf16.gmra.mrb[0].mxu0 %v899
        %v1322 = vpop.f32.mrb[0].mxu0
        %v1323 = vadd.f32 %v1258, %v1322
        %v1324 = vpop.f32.mrb[0].mxu0
        %v1325 = vpop.f32.mrb[0].mxu0
        %v1326 = vadd.f32 %v1261, %v1325
        %v1327 = vpop.f32.mrb[0].mxu0
        %1328 = vmatprep.mubr.bf16.mxu0 %v905
        %1329 = vmatmul.mubr.bf16.gmra.mrb[0].mxu0 %v904
        %v1330 = vpop.f32.mrb[0].mxu0
        %v1331 = vadd.f32 %v1266, %v1330
        %v1332 = vpop.f32.mrb[0].mxu0
        %v1333 = vpop.f32.mrb[0].mxu0
        %v1334 = vadd.f32 %v1269, %v1333
        %v1335 = vpop.f32.mrb[0].mxu0
        %1336 = vdwg.mxu0
        %1337 = vmatprep.subr.bf16.mxu0 0
        %1338 = vmatpush1.bf16.msra.mxu0 %v1155
        %1339 = vmatprep.subr.bf16.mxu0 0
        %1340 = vmatpush1.bf16.msra.mxu0 %v1156
        %1341 = vmatprep.subr.bf16.mxu0 0
        %1342 = vmatpush1.bf16.msra.mxu0 %v1157
        %1343 = vmatprep.subr.bf16.mxu0 0
        %1344 = vmatpush1.bf16.msra.mxu0 %v1158
        %1345 = vmatprep.subr.bf16.mxu0 0
        %1346 = vmatpush1.bf16.msra.mxu0 0
        %1347 = vmatprep.subr.bf16.mxu0 0
        %1348 = vmatpush1.bf16.msra.mxu0 0
        %1349 = vmatprep.subr.bf16.mxu0 0
        %1350 = vmatpush1.bf16.msra.mxu0 0
        %1351 = vmatprep.subr.bf16.mxu0 0
        %1352 = vmatpush1.bf16.msra.mxu0 0
        %1353 = vmatprep.subr.bf16.mxu0 0
        %1354 = vmatpush1.bf16.msra.mxu0 0
        %1355 = vmatprep.subr.bf16.mxu0 0
        %1356 = vmatpush1.bf16.msra.mxu0 0
        %1357 = vmatprep.subr.bf16.mxu0 0
        %1358 = vmatpush1.bf16.msra.mxu0 0
        %1359 = vmatprep.subr.bf16.mxu0 0
        %1360 = vmatpush1.bf16.msra.mxu0 0
        %1361 = vmatprep.subr.bf16.mxu0 0
        %1362 = vmatpush1.bf16.msra.mxu0 0
        %1363 = vmatprep.subr.bf16.mxu0 0
        %1364 = vmatpush1.bf16.msra.mxu0 0
        %1365 = vmatprep.subr.bf16.mxu0 0
        %1366 = vmatpush1.bf16.msra.mxu0 0
        %1367 = vmatprep.subr.bf16.mxu0 0
        %1368 = vmatpush1.bf16.msra.mxu0 0
        %1369 = vmatprep.mubr.bf16.mxu0 0
        %1370 = vmatmul.mubr.bf16.gmra.mrb[0].mxu0 %v1196
        %v1371 = vpop.f32.mrb[0].mxu0
        %v1372 = vadd.f32 %v1307, %v1371
        %v1373 = vpop.f32.mrb[0].mxu0
        %v1374 = vpop.f32.mrb[0].mxu0
        %v1375 = vadd.f32 %v1310, %v1374
        %v1376 = vpop.f32.mrb[0].mxu0
        %1377 = vmatprep.mubr.bf16.mxu0 0
        %1378 = vmatmul.mubr.bf16.gmra.mrb[0].mxu0 %v1199
        %v1379 = vpop.f32.mrb[0].mxu0
        %v1380 = vadd.f32 %v1315, %v1379
        %v1381 = vpop.f32.mrb[0].mxu0
        %v1382 = vpop.f32.mrb[0].mxu0
        %v1383 = vadd.f32 %v1318, %v1382
        %v1384 = vpop.f32.mrb[0].mxu0
        %1385 = vmatprep.mubr.bf16.mxu0 0
        %1386 = vmatmul.mubr.bf16.gmra.mrb[0].mxu0 %v1202
        %v1387 = vpop.f32.mrb[0].mxu0
        %v1388 = vadd.f32 %v1323, %v1387
        %v1389 = vpop.f32.mrb[0].mxu0
        %v1390 = vpop.f32.mrb[0].mxu0
        %v1391 = vadd.f32 %v1326, %v1390
        %v1392 = vpop.f32.mrb[0].mxu0
        %1393 = vmatprep.mubr.bf16.mxu0 0
        %1394 = vmatmul.mubr.bf16.gmra.mrb[0].mxu0 %v1205
        %v1395 = vpop.f32.mrb[0].mxu0
        %v1396 = vadd.f32 %v1331, %v1395
        %v1397 = vpop.f32.mrb[0].mxu0
        %v1398 = vpop.f32.mrb[0].mxu0
        %v1399 = vadd.f32 %v1334, %v1398
        %v1400 = vpop.f32.mrb[0].mxu0
        %1401 = vdwg.mxu0
        %1410 = vrot.lane.b32.xlu0 %v1372, 96
        %v1411 = vpop.permute.xlu0 %1410
        %1412 = vrot.lane.b32.xlu0 %v1375, 96
        %v1413 = vpop.permute.xlu0 %1412
        %1414 = vrot.lane.b32.xlu0 %v1380, 96
        %v1415 = vpop.permute.xlu0 %1414
        %1416 = vrot.lane.b32.xlu0 %v1383, 96
        %v1417 = vpop.permute.xlu0 %1416
        %1418 = vrot.lane.b32.xlu0 %v1388, 96
        %v1419 = vpop.permute.xlu0 %1418
        %1420 = vrot.lane.b32.xlu0 %v1391, 96
        %v1421 = vpop.permute.xlu0 %1420
        %1422 = vrot.lane.b32.xlu0 %v1396, 96
        %v1423 = vpop.permute.xlu0 %1422
        %1424 = vrot.lane.b32.xlu0 %v1399, 96
        %v1425 = vpop.permute.xlu0 %1424
        %v1434 = vmax.f32 %v1372, %v1411
        %v1435 = vmax.f32 %v1375, %v1413
        %v1436 = vmax.f32 %v1380, %v1415
        %v1437 = vmax.f32 %v1383, %v1417
        %v1438 = vmax.f32 %v1388, %v1419
        %v1439 = vmax.f32 %v1391, %v1421
        %v1440 = vmax.f32 %v1396, %v1423
        %v1441 = vmax.f32 %v1399, %v1425
        %1450 = vrot.lane.b32.xlu0 %v1434, 64
        %v1451 = vpop.permute.xlu0 %1450
        %1452 = vrot.lane.b32.xlu0 %v1435, 64
        %v1453 = vpop.permute.xlu0 %1452
        %1454 = vrot.lane.b32.xlu0 %v1436, 64
        %v1455 = vpop.permute.xlu0 %1454
        %1456 = vrot.lane.b32.xlu0 %v1437, 64
        %v1457 = vpop.permute.xlu0 %1456
        %1458 = vrot.lane.b32.xlu0 %v1438, 64
        %v1459 = vpop.permute.xlu0 %1458
        %1460 = vrot.lane.b32.xlu0 %v1439, 64
        %v1461 = vpop.permute.xlu0 %1460
        %1462 = vrot.lane.b32.xlu0 %v1440, 64
        %v1463 = vpop.permute.xlu0 %1462
        %1464 = vrot.lane.b32.xlu0 %v1441, 64
        %v1465 = vpop.permute.xlu0 %1464
        %v1474 = vmax.f32 %v1434, %v1451
        %v1475 = vmax.f32 %v1435, %v1453
        %v1476 = vmax.f32 %v1436, %v1455
        %v1477 = vmax.f32 %v1437, %v1457
        %v1478 = vmax.f32 %v1438, %v1459
        %v1479 = vmax.f32 %v1439, %v1461
        %v1480 = vmax.f32 %v1440, %v1463
        %v1481 = vmax.f32 %v1441, %v1465
        %v1482 = vld [vmem:[%s4] sm:$0x1]
        %v1484 = vlaneseq
        %v1485 = vshrl.u32 %v1484, 7
        %v1486 = vsub.s32 0, %v1485
        %v1487 = vrot.slane %v1482, %v1486
        %v1489 = vadd.f32 %v1474, %v1487
        %v1490 = vadd.f32 %v1475, %v1487
        %v1491 = vadd.f32 %v1476, %v1487
        %v1492 = vadd.f32 %v1477, %v1487
        %v1493 = vadd.f32 %v1478, %v1487
        %v1494 = vadd.f32 %v1479, %v1487
        %v1495 = vadd.f32 %v1480, %v1487
        %v1496 = vadd.f32 %v1481, %v1487
        %v1497 = vmax.f32 %v1489, 0.0
        %v1498 = vmax.f32 %v1490, 0.0
        %v1499 = vmax.f32 %v1491, 0.0
        %v1500 = vmax.f32 %v1492, 0.0
        %v1501 = vmax.f32 %v1493, 0.0
        %v1502 = vmax.f32 %v1494, 0.0
        %v1503 = vmax.f32 %v1495, 0.0
        %v1504 = vmax.f32 %v1496, 0.0
        %1513 = vrot.lane.b32.xlu0 %v1497, 32
        %v1514 = vpop.permute.xlu0 %1513
        %1515 = vrot.lane.b32.xlu0 %v1498, 32
        %v1516 = vpop.permute.xlu0 %1515
        %1517 = vrot.lane.b32.xlu0 %v1499, 32
        %v1518 = vpop.permute.xlu0 %1517
        %1519 = vrot.lane.b32.xlu0 %v1500, 32
        %v1520 = vpop.permute.xlu0 %1519
        %1521 = vrot.lane.b32.xlu0 %v1501, 32
        %v1522 = vpop.permute.xlu0 %1521
        %1523 = vrot.lane.b32.xlu0 %v1502, 32
        %v1524 = vpop.permute.xlu0 %1523
        %1525 = vrot.lane.b32.xlu0 %v1503, 32
        %v1526 = vpop.permute.xlu0 %1525
        %1527 = vrot.lane.b32.xlu0 %v1504, 32
        %v1528 = vpop.permute.xlu0 %1527
        %1537 = vrot.lane.b32.xlu0 %v1497, 64
        %v1538 = vpop.permute.xlu0 %1537
        %1539 = vrot.lane.b32.xlu0 %v1498, 64
        %v1540 = vpop.permute.xlu0 %1539
        %1541 = vrot.lane.b32.xlu0 %v1499, 64
        %v1542 = vpop.permute.xlu0 %1541
        %1543 = vrot.lane.b32.xlu0 %v1500, 64
        %v1544 = vpop.permute.xlu0 %1543
        %1545 = vrot.lane.b32.xlu0 %v1501, 64
        %v1546 = vpop.permute.xlu0 %1545
        %1547 = vrot.lane.b32.xlu0 %v1502, 64
        %v1548 = vpop.permute.xlu0 %1547
        %1549 = vrot.lane.b32.xlu0 %v1503, 64
        %v1550 = vpop.permute.xlu0 %1549
        %1551 = vrot.lane.b32.xlu0 %v1504, 64
        %v1552 = vpop.permute.xlu0 %1551
        %1561 = vrot.lane.b32.xlu0 %v1497, 96
        %v1562 = vpop.permute.xlu0 %1561
        %1563 = vrot.lane.b32.xlu0 %v1498, 96
        %v1564 = vpop.permute.xlu0 %1563
        %1565 = vrot.lane.b32.xlu0 %v1499, 96
        %v1566 = vpop.permute.xlu0 %1565
        %1567 = vrot.lane.b32.xlu0 %v1500, 96
        %v1568 = vpop.permute.xlu0 %1567
        %1569 = vrot.lane.b32.xlu0 %v1501, 96
        %v1570 = vpop.permute.xlu0 %1569
        %1571 = vrot.lane.b32.xlu0 %v1502, 96
        %v1572 = vpop.permute.xlu0 %1571
        %1573 = vrot.lane.b32.xlu0 %v1503, 96
        %v1574 = vpop.permute.xlu0 %1573
        %1575 = vrot.lane.b32.xlu0 %v1504, 96
        %v1576 = vpop.permute.xlu0 %1575
        %v1585 = vsel %vm407, %v1497, %v1514
        %v1586 = vsel %vm407, %v1498, %v1516
        %v1587 = vsel %vm407, %v1499, %v1518
        %v1588 = vsel %vm407, %v1500, %v1520
        %v1589 = vsel %vm407, %v1501, %v1522
        %v1590 = vsel %vm407, %v1502, %v1524
        %v1591 = vsel %vm407, %v1503, %v1526
        %v1592 = vsel %vm407, %v1504, %v1528
        %v1593 = vsel %vm439, %v1585, %v1538
        %v1594 = vsel %vm439, %v1586, %v1540
        %v1595 = vsel %vm439, %v1587, %v1542
        %v1596 = vsel %vm439, %v1588, %v1544
        %v1597 = vsel %vm439, %v1589, %v1546
        %v1598 = vsel %vm439, %v1590, %v1548
        %v1599 = vsel %vm439, %v1591, %v1550
        %v1600 = vsel %vm439, %v1592, %v1552
        %vm1601 = vcmask 785408
        %v1602 = vsel %vm1601, %v1593, %v1562
        %v1603 = vsel %vm1601, %v1594, %v1564
        %v1604 = vsel %vm1601, %v1595, %v1566
        %v1605 = vsel %vm1601, %v1596, %v1568
        %v1606 = vsel %vm1601, %v1597, %v1570
        %v1607 = vsel %vm1601, %v1598, %v1572
        %v1608 = vsel %vm1601, %v1599, %v1574
        %v1609 = vsel %vm1601, %v1600, %v1576
        %v1610 = vld [vmem:[%s5] sm:$0xff]
        %v1611 = vld [vmem:[%s5 + $0x8] sm:$0xff]
        %v1612 = vld [vmem:[%s5 + $0x10] sm:$0xff]
        %v1613 = vld [vmem:[%s5 + $0x18] sm:$0xff]
        %v1614 = vld [vmem:[%s5 + $0x20] sm:$0xff]
        %v1615 = vld [vmem:[%s5 + $0x28] sm:$0xff]
        %v1616 = vld [vmem:[%s5 + $0x30] sm:$0xff]
        %v1617 = vld [vmem:[%s5 + $0x38] sm:$0xff]
        %v1618 = vld [vmem:[%s5 + $0x40] sm:$0xff]
        %v1619 = vld [vmem:[%s5 + $0x48] sm:$0xff]
        %v1620 = vld [vmem:[%s5 + $0x50] sm:$0xff]
        %v1621 = vld [vmem:[%s5 + $0x58] sm:$0xff]
        %v1622 = vld [vmem:[%s5 + $0x60] sm:$0xff]
        %v1623 = vld [vmem:[%s5 + $0x68] sm:$0xff]
        %v1624 = vld [vmem:[%s5 + $0x70] sm:$0xff]
        %v1625 = vld [vmem:[%s5 + $0x78] sm:$0xff]
        %v1626 = vld [vmem:[%s5 + $0x80] sm:$0xff]
        %v1627 = vld [vmem:[%s5 + $0x88] sm:$0xff]
        %v1628 = vld [vmem:[%s5 + $0x90] sm:$0xff]
        %v1629 = vld [vmem:[%s5 + $0x98] sm:$0xff]
        %v1630 = vld [vmem:[%s5 + $0xa0] sm:$0xff]
        %v1631 = vld [vmem:[%s5 + $0xa8] sm:$0x1f]
        %v1632 = vld [vmem:[%s5 + $0xb0] sm:$0x1f]
        %v1633 = vld [vmem:[%s5 + $0xb8] sm:$0x1f]
        %v1634 = vmul.f32 %v1602, %v1610
        %v1635 = vmul.f32 %v1602, %v1611
        %v1636 = vmul.f32 %v1585, %v1612
        %v1637 = vmul.f32 %v1603, %v1613
        %v1638 = vmul.f32 %v1603, %v1614
        %v1639 = vmul.f32 %v1586, %v1615
        %v1640 = vmul.f32 %v1604, %v1616
        %v1641 = vmul.f32 %v1604, %v1617
        %v1642 = vmul.f32 %v1587, %v1618
        %v1643 = vmul.f32 %v1605, %v1619
        %v1644 = vmul.f32 %v1605, %v1620
        %v1645 = vmul.f32 %v1588, %v1621
        %v1646 = vmul.f32 %v1606, %v1622
        %v1647 = vmul.f32 %v1606, %v1623
        %v1648 = vmul.f32 %v1589, %v1624
        %v1649 = vmul.f32 %v1607, %v1625
        %v1650 = vmul.f32 %v1607, %v1626
        %v1651 = vmul.f32 %v1590, %v1627
        %v1652 = vmul.f32 %v1608, %v1628
        %v1653 = vmul.f32 %v1608, %v1629
        %v1654 = vmul.f32 %v1591, %v1630
        %v1655 = vmul.f32 %v1609, %v1631
        %v1656 = vmul.f32 %v1609, %v1632
        %v1657 = vmul.f32 %v1592, %v1633
        %v1658 = vadd.f32 %v1634, %v1637
        %v1659 = vadd.f32 %v1658, %v1640
        %v1660 = vadd.f32 %v1659, %v1643
        %v1661 = vadd.f32 %v1660, %v1646
        %v1662 = vadd.f32 %v1661, %v1649
        %v1663 = vadd.f32 %v1662, %v1652
        %v1664 = vsel %vm781, %v1655, 0.0
        %v1665 = vadd.f32 %v1663, %v1664
        %v1666 = vrot.slane %v1665, 4
        %v1667 = vadd.f32 %v1665, %v1666
        %v1668 = vrot.slane %v1667, 2
        %v1669 = vadd.f32 %v1667, %v1668
        %v1670 = vrot.slane %v1669, 1
        %v1671 = vadd.f32 %v1669, %v1670
        %v1672 = vadd.f32 %v1635, %v1638
        %v1673 = vadd.f32 %v1672, %v1641
        %v1674 = vadd.f32 %v1673, %v1644
        %v1675 = vadd.f32 %v1674, %v1647
        %v1676 = vadd.f32 %v1675, %v1650
        %v1677 = vadd.f32 %v1676, %v1653
        %v1678 = vsel %vm781, %v1656, 0.0
        %v1679 = vadd.f32 %v1677, %v1678
        %v1680 = vrot.slane %v1679, 4
        %v1681 = vadd.f32 %v1679, %v1680
        %v1682 = vrot.slane %v1681, 2
        %v1683 = vadd.f32 %v1681, %v1682
        %v1684 = vrot.slane %v1683, 1
        %v1685 = vadd.f32 %v1683, %v1684
        %v1686 = vsel %vm439, %v1636, 0.0
        %v1687 = vsel %vm439, %v1639, 0.0
        %v1688 = vadd.f32 %v1686, %v1687
        %v1689 = vsel %vm439, %v1642, 0.0
        %v1690 = vadd.f32 %v1688, %v1689
        %v1691 = vsel %vm439, %v1645, 0.0
        %v1692 = vadd.f32 %v1690, %v1691
        %v1693 = vsel %vm439, %v1648, 0.0
        %v1694 = vadd.f32 %v1692, %v1693
        %v1695 = vsel %vm439, %v1651, 0.0
        %v1696 = vadd.f32 %v1694, %v1695
        %v1697 = vsel %vm439, %v1654, 0.0
        %v1698 = vadd.f32 %v1696, %v1697
        %vm1699 = vcmask 520192
        %v1700 = vsel %vm1699, %v1657, 0.0
        %v1701 = vadd.f32 %v1698, %v1700
        %v1702 = vrot.slane %v1701, 4
        %v1703 = vadd.f32 %v1701, %v1702
        %v1704 = vrot.slane %v1703, 2
        %v1705 = vadd.f32 %v1703, %v1704
        %v1706 = vrot.slane %v1705, 1
        %v1707 = vadd.f32 %v1705, %v1706
        %v1708 = vld [vmem:[%s6] sm:$0xff]
        %v1709 = vld [vmem:[%s6 + $0x8] sm:$0xff]
        %v1710 = vld [vmem:[%s6 + $0x10] sm:$0xff]
        %v1711 = vld [vmem:[%s6 + $0x18] sm:$0xff]
        %v1712 = vld [vmem:[%s6 + $0x20] sm:$0xff]
        %v1713 = vld [vmem:[%s6 + $0x28] sm:$0xff]
        %v1714 = vld [vmem:[%s6 + $0x30] sm:$0xff]
        %v1715 = vld [vmem:[%s6 + $0x38] sm:$0xff]
        %v1716 = vld [vmem:[%s6 + $0x40] sm:$0xff]
        %v1717 = vld [vmem:[%s6 + $0x48] sm:$0xff]
        %v1718 = vld [vmem:[%s6 + $0x50] sm:$0xff]
        %v1719 = vld [vmem:[%s6 + $0x58] sm:$0xff]
        %v1720 = vld [vmem:[%s6 + $0x60] sm:$0xff]
        %v1721 = vld [vmem:[%s6 + $0x68] sm:$0xff]
        %v1722 = vld [vmem:[%s6 + $0x70] sm:$0xff]
        %v1723 = vld [vmem:[%s6 + $0x78] sm:$0xff]
        %v1724 = vld [vmem:[%s6 + $0x80] sm:$0xff]
        %v1725 = vld [vmem:[%s6 + $0x88] sm:$0xff]
        %v1726 = vld [vmem:[%s6 + $0x90] sm:$0xff]
        %v1727 = vld [vmem:[%s6 + $0x98] sm:$0xff]
        %v1728 = vld [vmem:[%s6 + $0xa0] sm:$0xff]
        %v1729 = vld [vmem:[%s6 + $0xa8] sm:$0xff]
        %v1730 = vld [vmem:[%s6 + $0xb0] sm:$0xff]
        %v1731 = vld [vmem:[%s6 + $0xb8] sm:$0xff]
        %v1732 = vld [vmem:[%s6 + $0xc0] sm:$0xff]
        %v1733 = vld [vmem:[%s6 + $0xc8] sm:$0xff]
        %v1734 = vld [vmem:[%s6 + $0xd0] sm:$0xff]
        %v1735 = vld [vmem:[%s6 + $0xd8] sm:$0xff]
        %v1736 = vld [vmem:[%s6 + $0xe0] sm:$0xff]
        %v1737 = vld [vmem:[%s6 + $0xe8] sm:$0xff]
        %v1738 = vld [vmem:[%s6 + $0xf0] sm:$0xff]
        %v1739 = vld [vmem:[%s6 + $0xf8] sm:$0xff]
        %v1740 = vld [vmem:[%s6 + $0x100] sm:$0xff]
        %v1741 = vld [vmem:[%s6 + $0x108] sm:$0xff]
        %v1742 = vld [vmem:[%s6 + $0x110] sm:$0xff]
        %v1743 = vld [vmem:[%s6 + $0x118] sm:$0xff]
        %v1744 = vld [vmem:[%s6 + $0x120] sm:$0xff]
        %v1745 = vld [vmem:[%s6 + $0x128] sm:$0xff]
        %v1746 = vld [vmem:[%s6 + $0x130] sm:$0xff]
        %v1747 = vld [vmem:[%s6 + $0x138] sm:$0xff]
        %v1748 = vld [vmem:[%s7] sm:$0x1]
        %v1750 = vsel %vm439, %v1707, 0
        %1752 = vmatprep.subr.mxu0 0.0
        %1753 = vmatpush1.msra.mxu0 %v1708
        %1754 = vmatprep.subr.mxu0 0.0
        %1755 = vmatpush1.msra.mxu0 %v1709
        %1756 = vmatprep.subr.mxu0 0.0
        %1757 = vmatpush1.msra.mxu0 %v1710
        %1758 = vmatprep.subr.mxu0 0.0
        %1759 = vmatpush1.msra.mxu0 %v1711
        %1760 = vmatprep.subr.mxu0 0.0
        %1761 = vmatpush1.msra.mxu0 %v1712
        %1762 = vmatprep.subr.mxu0 0.0
        %1763 = vmatpush1.msra.mxu0 %v1713
        %1764 = vmatprep.subr.mxu0 0.0
        %1765 = vmatpush1.msra.mxu0 %v1714
        %1766 = vmatprep.subr.mxu0 0.0
        %1767 = vmatpush1.msra.mxu0 %v1715
        %1768 = vmatprep.subr.mxu0 0.0
        %1769 = vmatpush1.msra.mxu0 %v1716
        %1770 = vmatprep.subr.mxu0 0.0
        %1771 = vmatpush1.msra.mxu0 %v1717
        %1772 = vmatprep.subr.mxu0 0.0
        %1773 = vmatpush1.msra.mxu0 %v1718
        %1774 = vmatprep.subr.mxu0 0.0
        %1775 = vmatpush1.msra.mxu0 %v1719
        %1776 = vmatprep.subr.mxu0 0.0
        %1777 = vmatpush1.msra.mxu0 %v1720
        %1778 = vmatprep.subr.mxu0 0.0
        %1779 = vmatpush1.msra.mxu0 %v1721
        %1780 = vmatprep.subr.mxu0 0.0
        %1781 = vmatpush1.msra.mxu0 %v1722
        %1782 = vmatprep.subr.mxu0 0.0
        %1783 = vmatpush1.msra.mxu0 %v1723
        %1784 = vmatprep.subr.mxu0 0.0
        %1785 = vmatpush1.msra.mxu0 %v1724
        %1786 = vmatprep.subr.mxu0 0.0
        %1787 = vmatpush1.msra.mxu0 %v1725
        %1788 = vmatprep.subr.mxu0 0.0
        %1789 = vmatpush1.msra.mxu0 %v1726
        %1790 = vmatprep.subr.mxu0 0.0
        %1791 = vmatpush1.msra.mxu0 %v1727
        %1792 = vmatprep.subr.mxu0 0.0
        %1793 = vmatpush1.msra.mxu0 %v1728
        %1794 = vmatprep.subr.mxu0 0.0
        %1795 = vmatpush1.msra.mxu0 %v1729
        %1796 = vmatprep.subr.mxu0 0.0
        %1797 = vmatpush1.msra.mxu0 %v1730
        %1798 = vmatprep.subr.mxu0 0.0
        %1799 = vmatpush1.msra.mxu0 %v1731
        %1800 = vmatprep.subr.mxu0 0.0
        %1801 = vmatpush1.msra.mxu0 %v1732
        %1802 = vmatprep.subr.mxu0 0.0
        %1803 = vmatpush1.msra.mxu0 %v1733
        %1804 = vmatprep.subr.mxu0 0.0
        %1805 = vmatpush1.msra.mxu0 %v1734
        %1806 = vmatprep.subr.mxu0 0.0
        %1807 = vmatpush1.msra.mxu0 %v1735
        %1808 = vmatprep.subr.mxu0 0.0
        %1809 = vmatpush1.msra.mxu0 %v1736
        %1810 = vmatprep.subr.mxu0 0.0
        %1811 = vmatpush1.msra.mxu0 %v1737
        %1812 = vmatprep.subr.mxu0 0.0
        %1813 = vmatpush1.msra.mxu0 %v1738
        %1814 = vmatprep.subr.mxu0 0.0
        %1815 = vmatpush1.msra.mxu0 %v1739
        %1816 = vmatprep.mubr.f32.mxu0 %v1685
        %1817 = vmatmul.mubr.f32.gmra.mrb[0].mxu0 %v1671
        %v1818 = vpop.f32.mrb[0].mxu0
        %v1819 = vadd.f32 %v1748, %v1818
        %v1820 = vpop.f32.mrb[0].mxu0
        %1821 = vdwg.mxu0
        %1822 = vmatprep.subr.mxu0 0.0
        %1823 = vmatpush1.msra.mxu0 %v1740
        %1824 = vmatprep.subr.mxu0 0.0
        %1825 = vmatpush1.msra.mxu0 %v1741
        %1826 = vmatprep.subr.mxu0 0.0
        %1827 = vmatpush1.msra.mxu0 %v1742
        %1828 = vmatprep.subr.mxu0 0.0
        %1829 = vmatpush1.msra.mxu0 %v1743
        %1830 = vmatprep.subr.mxu0 0.0
        %1831 = vmatpush1.msra.mxu0 %v1744
        %1832 = vmatprep.subr.mxu0 0.0
        %1833 = vmatpush1.msra.mxu0 %v1745
        %1834 = vmatprep.subr.mxu0 0.0
        %1835 = vmatpush1.msra.mxu0 %v1746
        %1836 = vmatprep.subr.mxu0 0.0
        %1837 = vmatpush1.msra.mxu0 %v1747
        %1838 = vmatprep.subr.mxu0 0.0
        %1839 = vmatpush1.msra.mxu0 0.0
        %1840 = vmatprep.subr.mxu0 0.0
        %1841 = vmatpush1.msra.mxu0 0.0
        %1842 = vmatprep.subr.mxu0 0.0
        %1843 = vmatpush1.msra.mxu0 0.0
        %1844 = vmatprep.subr.mxu0 0.0
        %1845 = vmatpush1.msra.mxu0 0.0
        %1846 = vmatprep.subr.mxu0 0.0
        %1847 = vmatpush1.msra.mxu0 0.0
        %1848 = vmatprep.subr.mxu0 0.0
        %1849 = vmatpush1.msra.mxu0 0.0
        %1850 = vmatprep.subr.mxu0 0.0
        %1851 = vmatpush1.msra.mxu0 0.0
        %1852 = vmatprep.subr.mxu0 0.0
        %1853 = vmatpush1.msra.mxu0 0.0
        %1854 = vmatprep.subr.mxu0 0.0
        %1855 = vmatpush1.msra.mxu0 0.0
        %1856 = vmatprep.subr.mxu0 0.0
        %1857 = vmatpush1.msra.mxu0 0.0
        %1858 = vmatprep.subr.mxu0 0.0
        %1859 = vmatpush1.msra.mxu0 0.0
        %1860 = vmatprep.subr.mxu0 0.0
        %1861 = vmatpush1.msra.mxu0 0.0
        %1862 = vmatprep.subr.mxu0 0.0
        %1863 = vmatpush1.msra.mxu0 0.0
        %1864 = vmatprep.subr.mxu0 0.0
        %1865 = vmatpush1.msra.mxu0 0.0
        %1866 = vmatprep.subr.mxu0 0.0
        %1867 = vmatpush1.msra.mxu0 0.0
        %1868 = vmatprep.subr.mxu0 0.0
        %1869 = vmatpush1.msra.mxu0 0.0
        %1870 = vmatprep.subr.mxu0 0.0
        %1871 = vmatpush1.msra.mxu0 0.0
        %1872 = vmatprep.subr.mxu0 0.0
        %1873 = vmatpush1.msra.mxu0 0.0
        %1874 = vmatprep.subr.mxu0 0.0
        %1875 = vmatpush1.msra.mxu0 0.0
        %1876 = vmatprep.subr.mxu0 0.0
        %1877 = vmatpush1.msra.mxu0 0.0
        %1878 = vmatprep.subr.mxu0 0.0
        %1879 = vmatpush1.msra.mxu0 0.0
        %1880 = vmatprep.subr.mxu0 0.0
        %1881 = vmatpush1.msra.mxu0 0.0
        %1882 = vmatprep.subr.mxu0 0.0
        %1883 = vmatpush1.msra.mxu0 0.0
        %1884 = vmatprep.subr.mxu0 0.0
        %1885 = vmatpush1.msra.mxu0 0.0
        %1886 = vmatprep.mubr.f32.mxu0 0.0
        %1887 = vmatmul.mubr.f32.gmra.mrb[0].mxu0 %v1750
        %v1888 = vpop.f32.mrb[0].mxu0
        %v1889 = vadd.f32 %v1819, %v1888
        %v1890 = vpop.f32.mrb[0].mxu0
        %1891 = vdwg.mxu0
        %vm1892 = vcmask 73728
        %v1893 = vsel %vm1892, %v1889, -inf
        %1894 = vmax.xlane.f32.xlu0 %v1893
        %v1895 = vpop.xlane.xlu0 %1894
        %v1896 = vsub.f32 %v1889, %v1895
        %v1897 = vmul.f32 %v1896, 1.442695
        %v1898 = vpow.pop %v1897
        %v1899 = vsel %vm1892, %v1898, 0.0
        %1900 = vadd.xlane.f32.xlu0 %v1899
        %v1901 = vpop.xlane.xlu0 %1900
        %v1902 = vlog2.pop %v1901
        %v1903 = vmul.f32 %v1902, 0.6931472
        %v1904 = vsub.f32 %v1896, %v1903
        %1905 = vst.msk [vmem:[%s297] sm:$0x1] %vm1892, %v1904
        %s1906 = sand.u32 %s203, 1
        %s1907 = scalar_lea.sflag [#allocation4], %s1906
        %s1908 = sand.u32 %s203, 1
        %s1909 = scalar_lea.vmem [#allocation3], %s1908
        // Predicated region
        $region53: #{_lambda_.1} parent=51 // pred_check
          %p1910 = pneg %p213
        $region54: #{_lambda_.1} parent=51 // pred_check_branch
          %1912 = sbr.rel (%p1910) target = $region56
        $region55: #{_lambda_.1} parent=51 // pred_region
          %s1914 = ssub.s32 16, 16
          %1915 = vsyncadd %s1907, %s1914
          %s1916 = smul.addr %s22, 16
          %s1917 = scalar_lea.hbm %s8, %s1916
          %s1919 = sshll.u32 %s1909, 4
          %s1920 = int_to_ptr.vmem [resolvable:$true] %s1919
          %1922 = dma.vmem_to_hbm [thread:$0]  %s1920, 16, %s1917, %s1907
        $region56: #{_lambda_.1} parent=51 // pred_fallthru
          _
      $region52: #{_lambda_.1} parent=5 // pred_fallthru
        _
      %p1923 = scmp.le.s32.totalorder 2, %s17
      // Predicated region
      $region57: #{_lambda_.1} parent=5 // pred_check
        %p1924 = pneg %p1923
      $region58: #{_lambda_.1} parent=5 // pred_check_branch
        %1926 = sbr.rel (%p1924) target = $region60
      $region59: #{_lambda_.1} parent=5 // pred_region
        %s1927 = ssub.s32 %s17, 2
        // Predicated region
        $region61: #{_lambda_.1} parent=59 // pred_check
          %p1928 = pneg %p219
        $region62: #{_lambda_.1} parent=59 // pred_check_branch
          %1930 = sbr.rel (%p1928) target = $region64
        $region63: #{_lambda_.1} parent=59 // pred_region
          %s1931 = sand.u32 %s204, 1
          %s1932 = scalar_lea.sflag [#allocation4], %s1931
          %s1933 = sand.u32 %s204, 1
          %s1934 = scalar_lea.vmem [#allocation3], %s1933
          %1935 = dma.done %s1932, 16
        $region64: #{_lambda_.1} parent=59 // pred_fallthru
          _
      $region60: #{_lambda_.1} parent=5 // pred_fallthru
        _
    $region6: #{_lambda_.1} parent=1 // loop_footer
      %s21 = sadd.s32 1, %s17
    $region7: #{_lambda_.1} parent=1 // loop_footer_branch
      %16 = sbr.rel target = $region3
    $region8: #{_lambda_.1} parent=1 // loop_exit
      _
    %1936 = vsyncpa [#allocation4], 1
    %s1937 = scalar_lea.sflag [#allocation4], 1
    %1938 = vsyncpa %s1937, 1

</llo_original>
